<compile_context>
chip_gen: v6e
topology: v6e:2x2x1
jax: 0.10.0
libtpu: 0.0.40
codegen_flags: <defaults>
</compile_context>

<pallas_src>
import functools

import jax
import jax.numpy as jnp
from jax.experimental import pallas as pl
from jax.experimental.pallas import tpu as pltpu


def _small_basic_block_kernel(x_ref, w1_ref, b1_ref, w2_ref, b2_ref,
                              w3_ref, b3_ref, w4_ref, b4_ref, o_ref, *, H, W):
    """Fused 1x1 -> 3x1 -> 1x3 -> 1x1 conv block, channel-major (C, H*W)."""
    f32 = jnp.float32
    M = H * W
    dot = functools.partial(jnp.dot, preferred_element_type=f32)

    x = x_ref[0].astype(f32)                                   # (Cin, M)

    # ---- stage 1: 1x1 conv + bias + ReLU ------------------------------------
    y1 = jnp.maximum(dot(w1_ref[...], x) + b1_ref[...], 0.0)   # (Cmid, M)

    # Banded 0/1 selection matrices: (y @ sel)[c, m] = y[c, src(m)], 0-padded.
    src = jax.lax.broadcasted_iota(jnp.int32, (M, M), 0)       # source column j
    dst = jax.lax.broadcasted_iota(jnp.int32, (M, M), 1)       # dest   column m

    # ---- stage 2: (3,1) conv over H (taps at h-1, h, h+1 == m -/+ W) + ReLU --
    sel_hm1 = (dst == src + W).astype(f32)                     # reads row h-1
    sel_hp1 = (dst == src - W).astype(f32)                     # reads row h+1
    y2 = (dot(w2_ref[0], dot(y1, sel_hm1))
          + dot(w2_ref[1], y1)
          + dot(w2_ref[2], dot(y1, sel_hp1)))
    y2 = jnp.maximum(y2 + b2_ref[...], 0.0)                    # (Cmid, M)

    # ---- stage 3: (1,3) conv over W (taps at w-1, w, w+1, no row wrap) + ReLU
    wcol = dst % W
    sel_wm1 = ((dst == src + 1) & (wcol != 0)).astype(f32)     # reads col w-1
    sel_wp1 = ((dst == src - 1) & (wcol != W - 1)).astype(f32) # reads col w+1
    y3 = (dot(w3_ref[0], dot(y2, sel_wm1))
          + dot(w3_ref[1], y2)
          + dot(w3_ref[2], dot(y2, sel_wp1)))
    y3 = jnp.maximum(y3 + b3_ref[...], 0.0)                    # (Cmid, M)

    # ---- stage 4: 1x1 conv + bias (no ReLU) ----------------------------------
    y4 = dot(w4_ref[...], y3) + b4_ref[...]                    # (Cout, M)
    o_ref[0] = y4.astype(o_ref.dtype)                          # lane-dense store


def small_basic_block_forward(x_nchw, params):
    """Pallas implementation of small_basic_block.forward (NCHW in / NCHW out)."""
    N, Cin, H, W = x_nchw.shape
    M = H * W
    (w1, b1, _, _), (w2, b2, _, _), (w3, b3, _, _), (w4, b4, _, _) = params
    Cmid = w1.shape[-1]
    Cout = w4.shape[-1]

    # NCHW -> (N, Cin, H*W): pure reshape, no transpose needed.
    x = x_nchw.reshape(N, Cin, M)

    # HWIO weights -> channel-major (Cout, Cin) matrices (taps leading).
    w1t = jnp.transpose(w1.reshape(Cin, Cmid))                    # (Cmid, Cin)
    w2t = jnp.transpose(w2.reshape(3, Cmid, Cmid), (0, 2, 1))     # (3, Cmid, Cmid)
    w3t = jnp.transpose(w3.reshape(3, Cmid, Cmid), (0, 2, 1))     # (3, Cmid, Cmid)
    w4t = jnp.transpose(w4.reshape(Cmid, Cout))                   # (Cout, Cmid)
    b1c = b1.reshape(Cmid, 1)
    b2c = b2.reshape(Cmid, 1)
    b3c = b3.reshape(Cmid, 1)
    b4c = b4.reshape(Cout, 1)

    kernel = functools.partial(_small_basic_block_kernel, H=H, W=W)

    def full(shape):
        return pl.BlockSpec(shape, lambda n: (0,) * len(shape))

    out = pl.pallas_call(
        kernel,
        out_shape=jax.ShapeDtypeStruct((N, Cout, M), x_nchw.dtype),
        grid=(N,),
        in_specs=[
            pl.BlockSpec((1, Cin, M), lambda n: (n, 0, 0)),
            full((Cmid, Cin)), full((Cmid, 1)),
            full((3, Cmid, Cmid)), full((Cmid, 1)),
            full((3, Cmid, Cmid)), full((Cmid, 1)),
            full((Cout, Cmid)), full((Cout, 1)),
        ],
        out_specs=pl.BlockSpec((1, Cout, M), lambda n: (n, 0, 0)),
        compiler_params=pltpu.CompilerParams(
            dimension_semantics=("parallel",),
            vmem_limit_bytes=32 * 1024 * 1024,
        ),
    )(x, w1t, b1c, w2t, b2c, w3t, b3c, w4t, b4c)

    # (N, Cout, H*W) -> NCHW: pure reshape.
    return out.reshape(N, Cout, H, W)


def _layer_cfg(ch_in, ch_out):
    ch_mid = ch_out // 4
    # (cin, cout, (KH, KW), (pad_h, pad_w), relu)  -- mirrors the nn.Sequential
    return [
        (ch_in,  ch_mid, (1, 1), (0, 0), True),
        (ch_mid, ch_mid, (3, 1), (1, 0), True),
        (ch_mid, ch_mid, (1, 3), (0, 1), True),
        (ch_mid, ch_out, (1, 1), (0, 0), False),
    ]


def init_params(key, ch_in, ch_out):
    """Deterministic init mimicking PyTorch Conv2d defaults (U(-1/sqrt(fan_in), ...))."""
    params = []
    for (cin, cout, (kh, kw), pad, relu) in _layer_cfg(ch_in, ch_out):
        key, kw_key, kb_key = jax.random.split(key, 3)
        fan_in = cin * kh * kw
        bound = 1.0 / (fan_in ** 0.5)
        w = jax.random.uniform(kw_key, (kh, kw, cin, cout),
                               minval=-bound, maxval=bound, dtype=jnp.float32)
        b = jax.random.uniform(kb_key, (cout,),
                               minval=-bound, maxval=bound, dtype=jnp.float32)
        params.append((w, b, pad, relu))
    return params


def reference_forward(x_nchw, params):
    """Pure-JAX reference (lax.conv, full f32 precision) for correctness checking."""
    y = jnp.transpose(x_nchw, (0, 2, 3, 1))
    for (w, b, pad, relu) in params:
        y = jax.lax.conv_general_dilated(
            y, w, window_strides=(1, 1),
            padding=[(pad[0], pad[0]), (pad[1], pad[1])],
            dimension_numbers=("NHWC", "HWIO", "NHWC"),
            precision=jax.lax.Precision.HIGHEST,
        ) + b
        if relu:
            y = jnp.maximum(y, 0.0)
    return jnp.transpose(y, (0, 3, 1, 2))


if __name__ == "__main__":
    N, CH_IN, H, W = 2, 4, 16, 16
    CH_OUT = 32

    key = jax.random.PRNGKey(0)
    x_key, p_key = jax.random.split(key)
    x = jax.random.normal(x_key, (N, CH_IN, H, W), dtype=jnp.float32)
    params = init_params(p_key, CH_IN, CH_OUT)

    out = jax.block_until_ready(small_basic_block_forward(x, params))
    assert out.shape == (N, CH_OUT, H, W), out.shape

    ref = reference_forward(x, params)
    if not bool(jnp.allclose(out, ref, atol=1e-4, rtol=1e-4)):
        max_err = float(jnp.max(jnp.abs(out - ref)))
        raise AssertionError(f"mismatch vs reference, max abs err = {max_err}")

    print("KERNEL_OK")
</pallas_src>

<mosaic_0001>
module attributes {stable_mosaic.version = 11 : i64} {
  func.func @_small_basic_block_kernel(%arg0: i32, %arg1: memref<1x4x256xf32, #tpu.memory_space<vmem>>, %arg2: memref<8x4xf32, #tpu.memory_space<vmem>>, %arg3: memref<8x1xf32, #tpu.memory_space<vmem>>, %arg4: memref<3x8x8xf32, #tpu.memory_space<vmem>>, %arg5: memref<8x1xf32, #tpu.memory_space<vmem>>, %arg6: memref<3x8x8xf32, #tpu.memory_space<vmem>>, %arg7: memref<8x1xf32, #tpu.memory_space<vmem>>, %arg8: memref<32x8xf32, #tpu.memory_space<vmem>>, %arg9: memref<32x1xf32, #tpu.memory_space<vmem>>, %arg10: memref<1x32x256xf32, #tpu.memory_space<vmem>>) attributes {dimension_semantics = [#tpu.dimension_semantics<parallel>], iteration_bounds = array<i64: 2>, scalar_prefetch = 0 : i64, scratch_operands = 0 : i64, tpu.core_type = #tpu.core_type<tc>, window_params = [{transform_indices = @transform_0, window_bounds = array<i64: 1, 4, 256>}, {pipeline_mode = #tpu.pipeline_mode<synchronous>, transform_indices = @transform_1, window_bounds = array<i64: 8, 4>}, {pipeline_mode = #tpu.pipeline_mode<synchronous>, transform_indices = @transform_2, window_bounds = array<i64: 8, 1>}, {pipeline_mode = #tpu.pipeline_mode<synchronous>, transform_indices = @transform_3, window_bounds = array<i64: 3, 8, 8>}, {pipeline_mode = #tpu.pipeline_mode<synchronous>, transform_indices = @transform_4, window_bounds = array<i64: 8, 1>}, {pipeline_mode = #tpu.pipeline_mode<synchronous>, transform_indices = @transform_5, window_bounds = array<i64: 3, 8, 8>}, {pipeline_mode = #tpu.pipeline_mode<synchronous>, transform_indices = @transform_6, window_bounds = array<i64: 8, 1>}, {pipeline_mode = #tpu.pipeline_mode<synchronous>, transform_indices = @transform_7, window_bounds = array<i64: 32, 8>}, {pipeline_mode = #tpu.pipeline_mode<synchronous>, transform_indices = @transform_8, window_bounds = array<i64: 32, 1>}, {transform_indices = @transform_9, window_bounds = array<i64: 1, 32, 256>}]} {
    %c0 = arith.constant 0 : index
    %c0_0 = arith.constant 0 : index
    %c0_1 = arith.constant 0 : index
    %0 = vector.load %arg1[%c0, %c0_0, %c0_1] : memref<1x4x256xf32, #tpu.memory_space<vmem>>, vector<1x4x256xf32>
    %1 = vector.shape_cast %0 : vector<1x4x256xf32> to vector<4x256xf32>
    %c0_2 = arith.constant 0 : index
    %c0_3 = arith.constant 0 : index
    %2 = vector.load %arg2[%c0_2, %c0_3] : memref<8x4xf32, #tpu.memory_space<vmem>>, vector<8x4xf32>
    %cst = arith.constant dense<0.000000e+00> : vector<8x256xf32>
    %3 = tpu.matmul %2, %1, %cst {dimension_numbers = #tpu.dot_dimension_numbers<[1], [0], [0], [1], [0, 0, 1, 1], [], []>} : vector<8x4xf32>, vector<4x256xf32>, vector<8x256xf32> -> vector<8x256xf32>
    %c0_4 = arith.constant 0 : index
    %c0_5 = arith.constant 0 : index
    %4 = vector.load %arg3[%c0_4, %c0_5] : memref<8x1xf32, #tpu.memory_space<vmem>>, vector<8x1xf32>
    %5 = vector.broadcast %4 : vector<8x1xf32> to vector<8x256xf32>
    %6 = arith.addf %3, %5 : vector<8x256xf32>
    %cst_6 = arith.constant 0.000000e+00 : f32
    %7 = vector.broadcast %cst_6 : f32 to vector<8x256xf32>
    %8 = arith.maximumf %6, %7 : vector<8x256xf32>
    %9 = tpu.iota {dimensions = array<i32: 0>} : vector<256x256xi32>
    %10 = tpu.iota {dimensions = array<i32: 1>} : vector<256x256xi32>
    %c16_i32 = arith.constant 16 : i32
    %11 = vector.broadcast %c16_i32 : i32 to vector<256x256xi32>
    %12 = arith.addi %9, %11 : vector<256x256xi32>
    %13 = arith.cmpi eq, %10, %12 : vector<256x256xi32>
    %14 = arith.extui %13 : vector<256x256xi1> to vector<256x256xi32>
    %15 = arith.sitofp %14 : vector<256x256xi32> to vector<256x256xf32>
    %c16_i32_7 = arith.constant 16 : i32
    %16 = vector.broadcast %c16_i32_7 : i32 to vector<256x256xi32>
    %17 = arith.subi %9, %16 : vector<256x256xi32>
    %18 = arith.cmpi eq, %10, %17 : vector<256x256xi32>
    %19 = arith.extui %18 : vector<256x256xi1> to vector<256x256xi32>
    %20 = arith.sitofp %19 : vector<256x256xi32> to vector<256x256xf32>
    %c0_8 = arith.constant 0 : index
    %c0_9 = arith.constant 0 : index
    %c0_10 = arith.constant 0 : index
    %21 = vector.load %arg4[%c0_8, %c0_9, %c0_10] : memref<3x8x8xf32, #tpu.memory_space<vmem>>, vector<1x8x8xf32>
    %22 = vector.shape_cast %21 : vector<1x8x8xf32> to vector<8x8xf32>
    %cst_11 = arith.constant dense<0.000000e+00> : vector<8x256xf32>
    %23 = tpu.matmul %8, %15, %cst_11 {dimension_numbers = #tpu.dot_dimension_numbers<[1], [0], [0], [1], [0, 0, 1, 1], [], []>} : vector<8x256xf32>, vector<256x256xf32>, vector<8x256xf32> -> vector<8x256xf32>
    %cst_12 = arith.constant dense<0.000000e+00> : vector<8x256xf32>
    %24 = tpu.matmul %22, %23, %cst_12 {dimension_numbers = #tpu.dot_dimension_numbers<[1], [0], [0], [1], [0, 0, 1, 1], [], []>} : vector<8x8xf32>, vector<8x256xf32>, vector<8x256xf32> -> vector<8x256xf32>
    %c1 = arith.constant 1 : index
    %c0_13 = arith.constant 0 : index
    %c0_14 = arith.constant 0 : index
    %25 = vector.load %arg4[%c1, %c0_13, %c0_14] : memref<3x8x8xf32, #tpu.memory_space<vmem>>, vector<1x8x8xf32>
    %26 = vector.shape_cast %25 : vector<1x8x8xf32> to vector<8x8xf32>
    %cst_15 = arith.constant dense<0.000000e+00> : vector<8x256xf32>
    %27 = tpu.matmul %26, %8, %cst_15 {dimension_numbers = #tpu.dot_dimension_numbers<[1], [0], [0], [1], [0, 0, 1, 1], [], []>} : vector<8x8xf32>, vector<8x256xf32>, vector<8x256xf32> -> vector<8x256xf32>
    %28 = arith.addf %24, %27 : vector<8x256xf32>
    %c2 = arith.constant 2 : index
    %c0_16 = arith.constant 0 : index
    %c0_17 = arith.constant 0 : index
    %29 = vector.load %arg4[%c2, %c0_16, %c0_17] : memref<3x8x8xf32, #tpu.memory_space<vmem>>, vector<1x8x8xf32>
    %30 = vector.shape_cast %29 : vector<1x8x8xf32> to vector<8x8xf32>
    %cst_18 = arith.constant dense<0.000000e+00> : vector<8x256xf32>
    %31 = tpu.matmul %8, %20, %cst_18 {dimension_numbers = #tpu.dot_dimension_numbers<[1], [0], [0], [1], [0, 0, 1, 1], [], []>} : vector<8x256xf32>, vector<256x256xf32>, vector<8x256xf32> -> vector<8x256xf32>
    %cst_19 = arith.constant dense<0.000000e+00> : vector<8x256xf32>
    %32 = tpu.matmul %30, %31, %cst_19 {dimension_numbers = #tpu.dot_dimension_numbers<[1], [0], [0], [1], [0, 0, 1, 1], [], []>} : vector<8x8xf32>, vector<8x256xf32>, vector<8x256xf32> -> vector<8x256xf32>
    %33 = arith.addf %28, %32 : vector<8x256xf32>
    %c0_20 = arith.constant 0 : index
    %c0_21 = arith.constant 0 : index
    %34 = vector.load %arg5[%c0_20, %c0_21] : memref<8x1xf32, #tpu.memory_space<vmem>>, vector<8x1xf32>
    %35 = vector.broadcast %34 : vector<8x1xf32> to vector<8x256xf32>
    %36 = arith.addf %33, %35 : vector<8x256xf32>
    %cst_22 = arith.constant 0.000000e+00 : f32
    %37 = vector.broadcast %cst_22 : f32 to vector<8x256xf32>
    %38 = arith.maximumf %36, %37 : vector<8x256xf32>
    %c16_i32_23 = arith.constant 16 : i32
    %c0_i32 = arith.constant 0 : i32
    %39 = arith.cmpi eq, %c16_i32_23, %c0_i32 : i32
    %c1_i32 = arith.constant 1 : i32
    %40 = arith.select %39, %c1_i32, %c16_i32_23 : i32
    %41 = vector.broadcast %40 : i32 to vector<256x256xi32>
    %42 = arith.remsi %10, %41 : vector<256x256xi32>
    %c0_i32_24 = arith.constant 0 : i32
    %43 = vector.broadcast %c0_i32_24 : i32 to vector<256x256xi32>
    %44 = arith.cmpi ne, %42, %43 : vector<256x256xi32>
    %c0_i32_25 = arith.constant 0 : i32
    %45 = vector.broadcast %c0_i32_25 : i32 to vector<256x256xi32>
    %46 = arith.cmpi slt, %42, %45 : vector<256x256xi32>
    %c0_i32_26 = arith.constant 0 : i32
    %47 = arith.cmpi slt, %40, %c0_i32_26 : i32
    %48 = vector.broadcast %47 : i1 to vector<256x256xi1>
    %49 = vector.broadcast %48 : vector<256x256xi1> to vector<256x256xi1>
    %50 = arith.xori %46, %49 : vector<256x256xi1>
    %51 = arith.andi %50, %44 : vector<256x256xi1>
    %52 = vector.broadcast %40 : i32 to vector<256x256xi32>
    %53 = arith.addi %42, %52 : vector<256x256xi32>
    %54 = arith.select %51, %53, %42 : vector<256x256xi1>, vector<256x256xi32>
    %c1_i32_27 = arith.constant 1 : i32
    %55 = vector.broadcast %c1_i32_27 : i32 to vector<256x256xi32>
    %56 = arith.addi %9, %55 : vector<256x256xi32>
    %57 = arith.cmpi eq, %10, %56 : vector<256x256xi32>
    %c0_i32_28 = arith.constant 0 : i32
    %58 = vector.broadcast %c0_i32_28 : i32 to vector<256x256xi32>
    %59 = arith.cmpi ne, %54, %58 : vector<256x256xi32>
    %60 = arith.andi %57, %59 : vector<256x256xi1>
    %61 = arith.extui %60 : vector<256x256xi1> to vector<256x256xi32>
    %62 = arith.sitofp %61 : vector<256x256xi32> to vector<256x256xf32>
    %c1_i32_29 = arith.constant 1 : i32
    %63 = vector.broadcast %c1_i32_29 : i32 to vector<256x256xi32>
    %64 = arith.subi %9, %63 : vector<256x256xi32>
    %65 = arith.cmpi eq, %10, %64 : vector<256x256xi32>
    %c15_i32 = arith.constant 15 : i32
    %66 = vector.broadcast %c15_i32 : i32 to vector<256x256xi32>
    %67 = arith.cmpi ne, %54, %66 : vector<256x256xi32>
    %68 = arith.andi %65, %67 : vector<256x256xi1>
    %69 = arith.extui %68 : vector<256x256xi1> to vector<256x256xi32>
    %70 = arith.sitofp %69 : vector<256x256xi32> to vector<256x256xf32>
    %c0_30 = arith.constant 0 : index
    %c0_31 = arith.constant 0 : index
    %c0_32 = arith.constant 0 : index
    %71 = vector.load %arg6[%c0_30, %c0_31, %c0_32] : memref<3x8x8xf32, #tpu.memory_space<vmem>>, vector<1x8x8xf32>
    %72 = vector.shape_cast %71 : vector<1x8x8xf32> to vector<8x8xf32>
    %cst_33 = arith.constant dense<0.000000e+00> : vector<8x256xf32>
    %73 = tpu.matmul %38, %62, %cst_33 {dimension_numbers = #tpu.dot_dimension_numbers<[1], [0], [0], [1], [0, 0, 1, 1], [], []>} : vector<8x256xf32>, vector<256x256xf32>, vector<8x256xf32> -> vector<8x256xf32>
    %cst_34 = arith.constant dense<0.000000e+00> : vector<8x256xf32>
    %74 = tpu.matmul %72, %73, %cst_34 {dimension_numbers = #tpu.dot_dimension_numbers<[1], [0], [0], [1], [0, 0, 1, 1], [], []>} : vector<8x8xf32>, vector<8x256xf32>, vector<8x256xf32> -> vector<8x256xf32>
    %c1_35 = arith.constant 1 : index
    %c0_36 = arith.constant 0 : index
    %c0_37 = arith.constant 0 : index
    %75 = vector.load %arg6[%c1_35, %c0_36, %c0_37] : memref<3x8x8xf32, #tpu.memory_space<vmem>>, vector<1x8x8xf32>
    %76 = vector.shape_cast %75 : vector<1x8x8xf32> to vector<8x8xf32>
    %cst_38 = arith.constant dense<0.000000e+00> : vector<8x256xf32>
    %77 = tpu.matmul %76, %38, %cst_38 {dimension_numbers = #tpu.dot_dimension_numbers<[1], [0], [0], [1], [0, 0, 1, 1], [], []>} : vector<8x8xf32>, vector<8x256xf32>, vector<8x256xf32> -> vector<8x256xf32>
    %78 = arith.addf %74, %77 : vector<8x256xf32>
    %c2_39 = arith.constant 2 : index
    %c0_40 = arith.constant 0 : index
    %c0_41 = arith.constant 0 : index
    %79 = vector.load %arg6[%c2_39, %c0_40, %c0_41] : memref<3x8x8xf32, #tpu.memory_space<vmem>>, vector<1x8x8xf32>
    %80 = vector.shape_cast %79 : vector<1x8x8xf32> to vector<8x8xf32>
    %cst_42 = arith.constant dense<0.000000e+00> : vector<8x256xf32>
    %81 = tpu.matmul %38, %70, %cst_42 {dimension_numbers = #tpu.dot_dimension_numbers<[1], [0], [0], [1], [0, 0, 1, 1], [], []>} : vector<8x256xf32>, vector<256x256xf32>, vector<8x256xf32> -> vector<8x256xf32>
    %cst_43 = arith.constant dense<0.000000e+00> : vector<8x256xf32>
    %82 = tpu.matmul %80, %81, %cst_43 {dimension_numbers = #tpu.dot_dimension_numbers<[1], [0], [0], [1], [0, 0, 1, 1], [], []>} : vector<8x8xf32>, vector<8x256xf32>, vector<8x256xf32> -> vector<8x256xf32>
    %83 = arith.addf %78, %82 : vector<8x256xf32>
    %c0_44 = arith.constant 0 : index
    %c0_45 = arith.constant 0 : index
    %84 = vector.load %arg7[%c0_44, %c0_45] : memref<8x1xf32, #tpu.memory_space<vmem>>, vector<8x1xf32>
    %85 = vector.broadcast %84 : vector<8x1xf32> to vector<8x256xf32>
    %86 = arith.addf %83, %85 : vector<8x256xf32>
    %cst_46 = arith.constant 0.000000e+00 : f32
    %87 = vector.broadcast %cst_46 : f32 to vector<8x256xf32>
    %88 = arith.maximumf %86, %87 : vector<8x256xf32>
    %c0_47 = arith.constant 0 : index
    %c0_48 = arith.constant 0 : index
    %89 = vector.load %arg8[%c0_47, %c0_48] : memref<32x8xf32, #tpu.memory_space<vmem>>, vector<32x8xf32>
    %cst_49 = arith.constant dense<0.000000e+00> : vector<32x256xf32>
    %90 = tpu.matmul %89, %88, %cst_49 {dimension_numbers = #tpu.dot_dimension_numbers<[1], [0], [0], [1], [0, 0, 1, 1], [], []>} : vector<32x8xf32>, vector<8x256xf32>, vector<32x256xf32> -> vector<32x256xf32>
    %c0_50 = arith.constant 0 : index
    %c0_51 = arith.constant 0 : index
    %91 = vector.load %arg9[%c0_50, %c0_51] : memref<32x1xf32, #tpu.memory_space<vmem>>, vector<32x1xf32>
    %92 = vector.broadcast %91 : vector<32x1xf32> to vector<32x256xf32>
    %93 = arith.addf %90, %92 : vector<32x256xf32>
    %c0_52 = arith.constant 0 : index
    %c0_53 = arith.constant 0 : index
    %c0_54 = arith.constant 0 : index
    %94 = vector.load %arg10[%c0_52, %c0_53, %c0_54] : memref<1x32x256xf32, #tpu.memory_space<vmem>>, vector<1x32x256xf32>
    %95 = vector.shape_cast %94 : vector<1x32x256xf32> to vector<32x256xf32>
    %96 = vector.shape_cast %93 : vector<32x256xf32> to vector<1x32x256xf32>
    tpu.vector_store %arg10[%c0_52, %c0_53, %c0_54], %96 {strides = array<i32>} : memref<1x32x256xf32, #tpu.memory_space<vmem>>, vector<1x32x256xf32>,
    return
  }
  func.func @transform_0(%arg0: i32) -> (i32, i32, i32) {
    %c0_i32 = arith.constant 0 : i32
    %c0_i32_0 = arith.constant 0 : i32
    %c0_i32_1 = arith.constant 0 : i32
    return %arg0, %c0_i32, %c0_i32_0 : i32, i32, i32
  }
  func.func @transform_1(%arg0: i32) -> (i32, i32) {
    %c0_i32 = arith.constant 0 : i32
    %c0_i32_0 = arith.constant 0 : i32
    %c0_i32_1 = arith.constant 0 : i32
    return %c0_i32, %c0_i32_0 : i32, i32
  }
  func.func @transform_2(%arg0: i32) -> (i32, i32) {
    %c0_i32 = arith.constant 0 : i32
    %c0_i32_0 = arith.constant 0 : i32
    %c0_i32_1 = arith.constant 0 : i32
    return %c0_i32, %c0_i32_0 : i32, i32
  }
  func.func @transform_3(%arg0: i32) -> (i32, i32, i32) {
    %c0_i32 = arith.constant 0 : i32
    %c0_i32_0 = arith.constant 0 : i32
    %c0_i32_1 = arith.constant 0 : i32
    %c0_i32_2 = arith.constant 0 : i32
    return %c0_i32, %c0_i32_0, %c0_i32_1 : i32, i32, i32
  }
  func.func @transform_4(%arg0: i32) -> (i32, i32) {
    %c0_i32 = arith.constant 0 : i32
    %c0_i32_0 = arith.constant 0 : i32
    %c0_i32_1 = arith.constant 0 : i32
    return %c0_i32, %c0_i32_0 : i32, i32
  }
  func.func @transform_5(%arg0: i32) -> (i32, i32, i32) {
    %c0_i32 = arith.constant 0 : i32
    %c0_i32_0 = arith.constant 0 : i32
    %c0_i32_1 = arith.constant 0 : i32
    %c0_i32_2 = arith.constant 0 : i32
    return %c0_i32, %c0_i32_0, %c0_i32_1 : i32, i32, i32
  }
  func.func @transform_6(%arg0: i32) -> (i32, i32) {
    %c0_i32 = arith.constant 0 : i32
    %c0_i32_0 = arith.constant 0 : i32
    %c0_i32_1 = arith.constant 0 : i32
    return %c0_i32, %c0_i32_0 : i32, i32
  }
  func.func @transform_7(%arg0: i32) -> (i32, i32) {
    %c0_i32 = arith.constant 0 : i32
    %c0_i32_0 = arith.constant 0 : i32
    %c0_i32_1 = arith.constant 0 : i32
    return %c0_i32, %c0_i32_0 : i32, i32
  }
  func.func @transform_8(%arg0: i32) -> (i32, i32) {
    %c0_i32 = arith.constant 0 : i32
    %c0_i32_0 = arith.constant 0 : i32
    %c0_i32_1 = arith.constant 0 : i32
    return %c0_i32, %c0_i32_0 : i32, i32
  }
  func.func @transform_9(%arg0: i32) -> (i32, i32, i32) {
    %c0_i32 = arith.constant 0 : i32
    %c0_i32_0 = arith.constant 0 : i32
    %c0_i32_1 = arith.constant 0 : i32
    return %arg0, %c0_i32, %c0_i32_0 : i32, i32, i32
  }
}

</mosaic_0001>

<llo_original>
// kernel: tpu_custom_call.1
$region0: #{tpu_custom_call.1}
  #allocation0 [shape = 'u32[]', space=smem, size = 0x4, offset = 0x4, fixed_abs, tag = 'smem constant byte address 0x4 - core index']
  #allocation1 [shape = 'u32[144,128]{1,0:T(1,128)}', space=vmem, size = 0x12000, scoped, tag = 'internal scratch']
  %s0 = inlined_call_operand.vmem [shape: f32[2,4,256], index: 0, kind: input, shape index: {}]
  %s1 = inlined_call_operand.vmem [shape: f32[8,4], index: 1, kind: input, shape index: {}]
  %s2 = inlined_call_operand.vmem [shape: f32[8,1], index: 2, kind: input, shape index: {}]
  %s3 = inlined_call_operand.vmem [shape: f32[3,8,8], index: 3, kind: input, shape index: {}]
  %s4 = inlined_call_operand.vmem [shape: f32[8,1], index: 4, kind: input, shape index: {}]
  %s5 = inlined_call_operand.vmem [shape: f32[3,8,8], index: 5, kind: input, shape index: {}]
  %s6 = inlined_call_operand.vmem [shape: f32[8,1], index: 6, kind: input, shape index: {}]
  %s7 = inlined_call_operand.vmem [shape: f32[32,8], index: 7, kind: input, shape index: {}]
  %s8 = inlined_call_operand.vmem [shape: f32[32,1], index: 8, kind: input, shape index: {}]
  %s9 = inlined_call_operand.hbm [shape: f32[2,32,256], index: 9, kind: output, shape index: {}]
  %s10 = sld [smem:[#allocation0]]
  $region69: #{tpu_custom_call.1} parent=0
    _
  %s12 = ssub.s32 1, %s10
  %s13 = scalar_select 0, %s12, %s10
  $region1: #{tpu_custom_call.1} parent=0
    #allocation2 [shape = 'u8[65536]{0}', space=vmem, size = 0x10000, scoped, tag = 'output window, operand 0']
    #allocation3 [shape = 's32[2]{0}', space=sflag, size = 0x8, scoped, tag = 'scoped memory for tpu_custom_call.1']
    %14 = vsyncpa [#allocation3], 0
    %s15 = scalar_lea.sflag [#allocation3], 1
    %16 = vsyncpa %s15, 0
    loop: start=0, step=1, limit=4
    $region2: #{tpu_custom_call.1} parent=1 // loop_pre_header
      _
    $region3: #{tpu_custom_call.1} parent=1 // loop_header
      %s18 = sphi 0, %s22
      %p19 = scmp.ge.s32.totalorder %s18, 4
      %s28 = sphi 0, %s30
      %s31 = sphi 0, %s28
      %s32 = sphi 0, %s31
      %s48 = sphi 0, %s32
      %s52 = sphi 0, %s52
      %s54 = sphi 0, %s52
      %s55 = sphi 0, %s54
      %s69 = sphi 0, %s55
      %s73 = sphi 0, %s73
      %s75 = sphi 0, %s73
      %s76 = sphi 0, %s75
      %s90 = sphi 0, %s76
      %s94 = sphi 0, %s94
      %s96 = sphi 0, %s94
      %s97 = sphi 0, %s96
      %s111 = sphi 0, %s97
      %s115 = sphi 0, %s115
      %s117 = sphi 0, %s115
      %s118 = sphi 0, %s117
      %s132 = sphi 0, %s118
      %s136 = sphi 0, %s136
      %s138 = sphi 0, %s136
      %s139 = sphi 0, %s138
      %s153 = sphi 0, %s139
      %s157 = sphi 0, %s157
      %s159 = sphi 0, %s157
      %s160 = sphi 0, %s159
      %s174 = sphi 0, %s160
      %s178 = sphi 0, %s178
      %s180 = sphi 0, %s178
      %s181 = sphi 0, %s180
      %s195 = sphi 0, %s181
      %s199 = sphi 0, %s199
      %s201 = sphi 0, %s199
      %s202 = sphi 0, %s201
      %s216 = sphi 0, %s202
      %s222 = sphi 0, %s224
      %s225 = sphi 0, %s222
      %s226 = sphi 0, %s225
      %s242 = sphi 0, %s226
    $region4: #{tpu_custom_call.1} parent=1 // loop_header_branch
      %21 = sbr.rel (%p19) target = $region8
    $region5: #{tpu_custom_call.1} parent=1 // loop_body
      %s23 = ssub.s32 %s18, 1
      %s24 = ssub.s32 %s18, 2
      %s25 = sadd.s32 %s18, 1
      %s26 = ssub.s32 %s18, %s25
      %p27 = scmp.eq.s32.totalorder %s26, 0
      %s29 = sadd.s32 %s28, 1
      %s30 = scalar_select %p27, %s28, %s29
      %p33 = pneg %p27
      %p34 = scmp.eq.s32.totalorder %s18, 1
      %p35 = por %p33, %p34
      %p36 = scmp.ne.s32.totalorder %s28, %s31
      %p37 = scmp.eq.s32.totalorder %s18, 0
      %p38 = por %p36, %p37
      %p39 = scmp.ne.s32.totalorder %s28, %s31
      %p40 = scmp.eq.s32.totalorder %s23, 1
      %p41 = por %p39, %p40
      %p42 = scmp.ne.s32.totalorder %s31, %s32
      %p43 = scmp.eq.s32.totalorder %s23, 0
      %p44 = por %p42, %p43
      %p45 = scmp.ne.s32.totalorder %s31, %s32
      %p46 = scmp.eq.s32.totalorder %s24, 1
      %p47 = por %p45, %p46
      %p49 = scmp.ne.s32.totalorder %s32, %s48
      %p50 = scmp.eq.s32.totalorder %s24, 0
      %p51 = por %p49, %p50
      %s53 = sadd.s32 %s52, 1
      %p56 = scmp.eq.s32.totalorder %s18, 1
      %p57 = scmp.ne.s32.totalorder %s52, %s54
      %p58 = scmp.eq.s32.totalorder %s18, 0
      %p59 = por %p57, %p58
      %p60 = scmp.ne.s32.totalorder %s52, %s54
      %p61 = scmp.eq.s32.totalorder %s23, 1
      %p62 = por %p60, %p61
      %p63 = scmp.ne.s32.totalorder %s54, %s55
      %p64 = scmp.eq.s32.totalorder %s23, 0
      %p65 = por %p63, %p64
      %p66 = scmp.ne.s32.totalorder %s54, %s55
      %p67 = scmp.eq.s32.totalorder %s24, 1
      %p68 = por %p66, %p67
      %p70 = scmp.ne.s32.totalorder %s55, %s69
      %p71 = scmp.eq.s32.totalorder %s24, 0
      %p72 = por %p70, %p71
      %s74 = sadd.s32 %s73, 1
      %p77 = scmp.eq.s32.totalorder %s18, 1
      %p78 = scmp.ne.s32.totalorder %s73, %s75
      %p79 = scmp.eq.s32.totalorder %s18, 0
      %p80 = por %p78, %p79
      %p81 = scmp.ne.s32.totalorder %s73, %s75
      %p82 = scmp.eq.s32.totalorder %s23, 1
      %p83 = por %p81, %p82
      %p84 = scmp.ne.s32.totalorder %s75, %s76
      %p85 = scmp.eq.s32.totalorder %s23, 0
      %p86 = por %p84, %p85
      %p87 = scmp.ne.s32.totalorder %s75, %s76
      %p88 = scmp.eq.s32.totalorder %s24, 1
      %p89 = por %p87, %p88
      %p91 = scmp.ne.s32.totalorder %s76, %s90
      %p92 = scmp.eq.s32.totalorder %s24, 0
      %p93 = por %p91, %p92
      %s95 = sadd.s32 %s94, 1
      %p98 = scmp.eq.s32.totalorder %s18, 1
      %p99 = scmp.ne.s32.totalorder %s94, %s96
      %p100 = scmp.eq.s32.totalorder %s18, 0
      %p101 = por %p99, %p100
      %p102 = scmp.ne.s32.totalorder %s94, %s96
      %p103 = scmp.eq.s32.totalorder %s23, 1
      %p104 = por %p102, %p103
      %p105 = scmp.ne.s32.totalorder %s96, %s97
      %p106 = scmp.eq.s32.totalorder %s23, 0
      %p107 = por %p105, %p106
      %p108 = scmp.ne.s32.totalorder %s96, %s97
      %p109 = scmp.eq.s32.totalorder %s24, 1
      %p110 = por %p108, %p109
      %p112 = scmp.ne.s32.totalorder %s97, %s111
      %p113 = scmp.eq.s32.totalorder %s24, 0
      %p114 = por %p112, %p113
      %s116 = sadd.s32 %s115, 1
      %p119 = scmp.eq.s32.totalorder %s18, 1
      %p120 = scmp.ne.s32.totalorder %s115, %s117
      %p121 = scmp.eq.s32.totalorder %s18, 0
      %p122 = por %p120, %p121
      %p123 = scmp.ne.s32.totalorder %s115, %s117
      %p124 = scmp.eq.s32.totalorder %s23, 1
      %p125 = por %p123, %p124
      %p126 = scmp.ne.s32.totalorder %s117, %s118
      %p127 = scmp.eq.s32.totalorder %s23, 0
      %p128 = por %p126, %p127
      %p129 = scmp.ne.s32.totalorder %s117, %s118
      %p130 = scmp.eq.s32.totalorder %s24, 1
      %p131 = por %p129, %p130
      %p133 = scmp.ne.s32.totalorder %s118, %s132
      %p134 = scmp.eq.s32.totalorder %s24, 0
      %p135 = por %p133, %p134
      %s137 = sadd.s32 %s136, 1
      %p140 = scmp.eq.s32.totalorder %s18, 1
      %p141 = scmp.ne.s32.totalorder %s136, %s138
      %p142 = scmp.eq.s32.totalorder %s18, 0
      %p143 = por %p141, %p142
      %p144 = scmp.ne.s32.totalorder %s136, %s138
      %p145 = scmp.eq.s32.totalorder %s23, 1
      %p146 = por %p144, %p145
      %p147 = scmp.ne.s32.totalorder %s138, %s139
      %p148 = scmp.eq.s32.totalorder %s23, 0
      %p149 = por %p147, %p148
      %p150 = scmp.ne.s32.totalorder %s138, %s139
      %p151 = scmp.eq.s32.totalorder %s24, 1
      %p152 = por %p150, %p151
      %p154 = scmp.ne.s32.totalorder %s139, %s153
      %p155 = scmp.eq.s32.totalorder %s24, 0
      %p156 = por %p154, %p155
      %s158 = sadd.s32 %s157, 1
      %p161 = scmp.eq.s32.totalorder %s18, 1
      %p162 = scmp.ne.s32.totalorder %s157, %s159
      %p163 = scmp.eq.s32.totalorder %s18, 0
      %p164 = por %p162, %p163
      %p165 = scmp.ne.s32.totalorder %s157, %s159
      %p166 = scmp.eq.s32.totalorder %s23, 1
      %p167 = por %p165, %p166
      %p168 = scmp.ne.s32.totalorder %s159, %s160
      %p169 = scmp.eq.s32.totalorder %s23, 0
      %p170 = por %p168, %p169
      %p171 = scmp.ne.s32.totalorder %s159, %s160
      %p172 = scmp.eq.s32.totalorder %s24, 1
      %p173 = por %p171, %p172
      %p175 = scmp.ne.s32.totalorder %s160, %s174
      %p176 = scmp.eq.s32.totalorder %s24, 0
      %p177 = por %p175, %p176
      %s179 = sadd.s32 %s178, 1
      %p182 = scmp.eq.s32.totalorder %s18, 1
      %p183 = scmp.ne.s32.totalorder %s178, %s180
      %p184 = scmp.eq.s32.totalorder %s18, 0
      %p185 = por %p183, %p184
      %p186 = scmp.ne.s32.totalorder %s178, %s180
      %p187 = scmp.eq.s32.totalorder %s23, 1
      %p188 = por %p186, %p187
      %p189 = scmp.ne.s32.totalorder %s180, %s181
      %p190 = scmp.eq.s32.totalorder %s23, 0
      %p191 = por %p189, %p190
      %p192 = scmp.ne.s32.totalorder %s180, %s181
      %p193 = scmp.eq.s32.totalorder %s24, 1
      %p194 = por %p192, %p193
      %p196 = scmp.ne.s32.totalorder %s181, %s195
      %p197 = scmp.eq.s32.totalorder %s24, 0
      %p198 = por %p196, %p197
      %s200 = sadd.s32 %s199, 1
      %p203 = scmp.eq.s32.totalorder %s18, 1
      %p204 = scmp.ne.s32.totalorder %s199, %s201
      %p205 = scmp.eq.s32.totalorder %s18, 0
      %p206 = por %p204, %p205
      %p207 = scmp.ne.s32.totalorder %s199, %s201
      %p208 = scmp.eq.s32.totalorder %s23, 1
      %p209 = por %p207, %p208
      %p210 = scmp.ne.s32.totalorder %s201, %s202
      %p211 = scmp.eq.s32.totalorder %s23, 0
      %p212 = por %p210, %p211
      %p213 = scmp.ne.s32.totalorder %s201, %s202
      %p214 = scmp.eq.s32.totalorder %s24, 1
      %p215 = por %p213, %p214
      %p217 = scmp.ne.s32.totalorder %s202, %s216
      %p218 = scmp.eq.s32.totalorder %s24, 0
      %p219 = por %p217, %p218
      %s220 = ssub.s32 %s18, %s25
      %p221 = scmp.eq.s32.totalorder %s220, 0
      %s223 = sadd.s32 %s222, 1
      %s224 = scalar_select %p221, %s222, %s223
      %p227 = pneg %p221
      %p228 = scmp.eq.s32.totalorder %s18, 1
      %p229 = por %p227, %p228
      %p230 = scmp.ne.s32.totalorder %s222, %s225
      %p231 = scmp.eq.s32.totalorder %s18, 0
      %p232 = por %p230, %p231
      %p233 = scmp.ne.s32.totalorder %s222, %s225
      %p234 = scmp.eq.s32.totalorder %s23, 1
      %p235 = por %p233, %p234
      %p236 = scmp.ne.s32.totalorder %s225, %s226
      %p237 = scmp.eq.s32.totalorder %s23, 0
      %p238 = por %p236, %p237
      %p239 = scmp.ne.s32.totalorder %s225, %s226
      %p240 = scmp.eq.s32.totalorder %s24, 1
      %p241 = por %p239, %p240
      %p243 = scmp.ne.s32.totalorder %s226, %s242
      %p244 = scmp.eq.s32.totalorder %s24, 0
      %p245 = por %p243, %p244
      %p246 = scmp.le.s32.totalorder 1, %s18
      %p247 = scmp.lt.s32.totalorder %s18, 3
      %p248 = pnand %p246, %p247
      %p249 = pneg %p248
      // Predicated region
      $region9: #{tpu_custom_call.1} parent=5 // pred_check
        _
      $region10: #{tpu_custom_call.1} parent=5 // pred_check_branch
        %251 = sbr.rel (%p248) target = $region12
      $region11: #{tpu_custom_call.1} parent=5 // pred_region
        %s252 = ssub.s32 %s18, 1
        // Predicated region
        $region13: #{tpu_custom_call.1} parent=11 // pred_check
          %p253 = pneg %p65
        $region14: #{tpu_custom_call.1} parent=11 // pred_check_branch
          %255 = sbr.rel (%p253) target = $region16
        $region15: #{tpu_custom_call.1} parent=11 // pred_region
          _
        $region16: #{tpu_custom_call.1} parent=11 // pred_fallthru
          _
        // Predicated region
        $region17: #{tpu_custom_call.1} parent=11 // pred_check
          %p256 = pneg %p86
        $region18: #{tpu_custom_call.1} parent=11 // pred_check_branch
          %258 = sbr.rel (%p256) target = $region20
        $region19: #{tpu_custom_call.1} parent=11 // pred_region
          _
        $region20: #{tpu_custom_call.1} parent=11 // pred_fallthru
          _
        // Predicated region
        $region21: #{tpu_custom_call.1} parent=11 // pred_check
          %p259 = pneg %p107
        $region22: #{tpu_custom_call.1} parent=11 // pred_check_branch
          %261 = sbr.rel (%p259) target = $region24
        $region23: #{tpu_custom_call.1} parent=11 // pred_region
          _
        $region24: #{tpu_custom_call.1} parent=11 // pred_fallthru
          _
        // Predicated region
        $region25: #{tpu_custom_call.1} parent=11 // pred_check
          %p262 = pneg %p128
        $region26: #{tpu_custom_call.1} parent=11 // pred_check_branch
          %264 = sbr.rel (%p262) target = $region28
        $region27: #{tpu_custom_call.1} parent=11 // pred_region
          _
        $region28: #{tpu_custom_call.1} parent=11 // pred_fallthru
          _
        // Predicated region
        $region29: #{tpu_custom_call.1} parent=11 // pred_check
          %p265 = pneg %p149
        $region30: #{tpu_custom_call.1} parent=11 // pred_check_branch
          %267 = sbr.rel (%p265) target = $region32
        $region31: #{tpu_custom_call.1} parent=11 // pred_region
          _
        $region32: #{tpu_custom_call.1} parent=11 // pred_fallthru
          _
        // Predicated region
        $region33: #{tpu_custom_call.1} parent=11 // pred_check
          %p268 = pneg %p170
        $region34: #{tpu_custom_call.1} parent=11 // pred_check_branch
          %270 = sbr.rel (%p268) target = $region36
        $region35: #{tpu_custom_call.1} parent=11 // pred_region
          _
        $region36: #{tpu_custom_call.1} parent=11 // pred_fallthru
          _
        // Predicated region
        $region37: #{tpu_custom_call.1} parent=11 // pred_check
          %p271 = pneg %p191
        $region38: #{tpu_custom_call.1} parent=11 // pred_check_branch
          %273 = sbr.rel (%p271) target = $region40
        $region39: #{tpu_custom_call.1} parent=11 // pred_region
          _
        $region40: #{tpu_custom_call.1} parent=11 // pred_fallthru
          _
        // Predicated region
        $region41: #{tpu_custom_call.1} parent=11 // pred_check
          %p274 = pneg %p212
        $region42: #{tpu_custom_call.1} parent=11 // pred_check_branch
          %276 = sbr.rel (%p274) target = $region44
        $region43: #{tpu_custom_call.1} parent=11 // pred_region
          _
        $region44: #{tpu_custom_call.1} parent=11 // pred_fallthru
          _
      $region12: #{tpu_custom_call.1} parent=5 // pred_fallthru
        _
      %p277 = scmp.lt.s32.totalorder %s18, 2
      // Predicated region
      $region45: #{tpu_custom_call.1} parent=5 // pred_check
        %p278 = pneg %p277
      $region46: #{tpu_custom_call.1} parent=5 // pred_check_branch
        %280 = sbr.rel (%p278) target = $region48
      $region47: #{tpu_custom_call.1} parent=5 // pred_region
        // Predicated region
        $region49: #{tpu_custom_call.1} parent=47 // pred_check
          %p281 = pneg %p38
        $region50: #{tpu_custom_call.1} parent=47 // pred_check_branch
          %283 = sbr.rel (%p281) target = $region52
        $region51: #{tpu_custom_call.1} parent=47 // pred_region
          %p284 = scmp.lt.s32.totalorder %s18, 1
          %s285 = scalar_select %p284, %s18, 1
          %s286 = smul.addr %s285, 2
          %s287 = smul.addr %s286, 4
          %s288 = scalar_lea.vmem %s0, %s287
        $region52: #{tpu_custom_call.1} parent=47 // pred_fallthru
          _
      $region48: #{tpu_custom_call.1} parent=5 // pred_fallthru
        _
      %p289 = scmp.le.s32.totalorder 1, %s18
      %p290 = scmp.lt.s32.totalorder %s18, 3
      %p291 = pnand %p289, %p290
      %p292 = pneg %p291
      // Predicated region
      $region53: #{tpu_custom_call.1} parent=5 // pred_check
        _
      $region54: #{tpu_custom_call.1} parent=5 // pred_check_branch
        %294 = sbr.rel (%p291) target = $region56
      $region55: #{tpu_custom_call.1} parent=5 // pred_region
        %s295 = ssub.s32 %s18, 1
        %p296 = scmp.lt.s32.totalorder %s23, 1
        %s297 = scalar_select %p296, %s23, 1
        %s298 = smul.addr %s297, 2
        %s299 = smul.addr %s298, 4
        %s300 = scalar_lea.vmem %s0, %s299
        %p301 = pneg %p44
        %p302 = pneg %p41
        %p303 = pneg %p65
        %p304 = pneg %p62
        %p305 = pneg %p86
        %p306 = pneg %p83
        %p307 = pneg %p107
        %p308 = pneg %p104
        %p309 = pneg %p128
        %p310 = pneg %p125
        %p311 = pneg %p149
        %p312 = pneg %p146
        %p313 = pneg %p170
        %p314 = pneg %p167
        %p315 = pneg %p191
        %p316 = pneg %p188
        %p317 = pneg %p212
        %p318 = pneg %p209
        %p319 = pneg %p238
        %p320 = pneg %p235
        %s321 = sand.u32 %s225, 1
        %s322 = scalar_lea.sflag [#allocation3], %s321
        %s323 = sand.u32 %s225, 1
        %s324 = smul.addr %s323, 64
        %s325 = scalar_lea.vmem [#allocation2], %s324
        %p326 = scmp.lt.s32.totalorder %s23, 1
        %s327 = scalar_select %p326, %s23, 1
        %s328 = smul.addr %s327, 2
        %s329 = smul.addr %s328, 4
        %s330 = scalar_lea.vmem %s0, %s329
        %v331 = vld [vmem:[%s330] sm:$0xff]
        %v332 = vld [vmem:[%s1] sm:$0xff]
        %v333 = vld [vmem:[%s2] sm:$0xff]
        %335 = vset.pattern.permute.xlu0 0
        %336 = vperm.xlu0 %335, %v333
        %v337 = vpop.permute.xlu0 %336
        %v340 = vcombine.high %v331, %v331
        %vm341 = vcmask 31744
        %v343 = vsel %vm341, %v332, 0
        %vm345 = vcmask 1043456
        %v346 = vsel %vm345, %v331, 0
        %v348 = vsel %vm345, %v340, 0
        %350 = vmatprep.subr.mxu0 0.0
        %351 = vmatpush1.msra.mxu0 0.0
        %352 = vmatprep.subr.mxu0 0.0
        %353 = vmatpush1.msra.mxu0 0.0
        %354 = vmatprep.subr.mxu0 0.0
        %355 = vmatpush1.msra.mxu0 0.0
        %356 = vmatprep.subr.mxu0 0.0
        %357 = vmatpush1.msra.mxu0 0.0
        %358 = vmatprep.subr.mxu0 0.0
        %359 = vmatpush1.msra.mxu0 0.0
        %360 = vmatprep.subr.mxu0 0.0
        %361 = vmatpush1.msra.mxu0 0.0
        %362 = vmatprep.subr.mxu0 0.0
        %363 = vmatpush1.msra.mxu0 0.0
        %364 = vmatprep.subr.mxu0 0.0
        %365 = vmatpush1.msra.mxu0 0.0
        %366 = vmatprep.subr.mxu0 0.0
        %367 = vmatpush1.msra.mxu0 0.0
        %368 = vmatprep.subr.mxu0 0.0
        %369 = vmatpush1.msra.mxu0 0.0
        %370 = vmatprep.subr.mxu0 0.0
        %371 = vmatpush1.msra.mxu0 0.0
        %372 = vmatprep.subr.mxu0 0.0
        %373 = vmatpush1.msra.mxu0 0.0
        %374 = vmatprep.subr.mxu0 0.0
        %375 = vmatpush1.msra.mxu0 0.0
        %376 = vmatprep.subr.mxu0 0.0
        %377 = vmatpush1.msra.mxu0 0.0
        %378 = vmatprep.subr.mxu0 0.0
        %379 = vmatpush1.msra.mxu0 0.0
        %380 = vmatprep.subr.mxu0 %v348
        %381 = vmatpush1.msra.mxu0 %v346
        %382 = vmatprep.subr.mxu0 0.0
        %383 = vmatpush2.msra.mxu0 0.0
        %384 = vmatprep.subr.mxu0 0.0
        %385 = vmatpush2.msra.mxu0 0.0
        %386 = vmatprep.subr.mxu0 0.0
        %387 = vmatpush2.msra.mxu0 0.0
        %388 = vmatprep.subr.mxu0 0.0
        %389 = vmatpush2.msra.mxu0 0.0
        %390 = vmatprep.subr.mxu0 0.0
        %391 = vmatpush2.msra.mxu0 0.0
        %392 = vmatprep.subr.mxu0 0.0
        %393 = vmatpush2.msra.mxu0 0.0
        %394 = vmatprep.subr.mxu0 0.0
        %395 = vmatpush2.msra.mxu0 0.0
        %396 = vmatprep.subr.mxu0 0.0
        %397 = vmatpush2.msra.mxu0 0.0
        %398 = vmatprep.subr.mxu0 0.0
        %399 = vmatpush2.msra.mxu0 0.0
        %400 = vmatprep.subr.mxu0 0.0
        %401 = vmatpush2.msra.mxu0 0.0
        %402 = vmatprep.subr.mxu0 0.0
        %403 = vmatpush2.msra.mxu0 0.0
        %404 = vmatprep.subr.mxu0 0.0
        %405 = vmatpush2.msra.mxu0 0.0
        %406 = vmatprep.subr.mxu0 0.0
        %407 = vmatpush2.msra.mxu0 0.0
        %408 = vmatprep.subr.mxu0 0.0
        %409 = vmatpush2.msra.mxu0 0.0
        %410 = vmatprep.subr.mxu0 0.0
        %411 = vmatpush2.msra.mxu0 0.0
        %412 = vmatprep.subr.mxu0 0.0
        %413 = vmatpush2.msra.mxu0 0.0
        %414 = vmatprep.mubr.f32.mxu0 0.0
        %415 = vmatmul.mubr.f32.gmra.mxu0 %v343
        %v416 = vpop.f32.mrf.mxu0
        %v417 = vadd.f32 %v337, %v416
        %v418 = vpop.f32.mrf.mxu0
        %v419 = vadd.f32 %v337, %v418
        %420 = vdwg.mxu0
        %v421 = vmax.f32 %v417, 0.0
        %v422 = vmax.f32 %v419, 0.0
        %v423 = vlaneseq
        %v424 = vshrl.u32 %v423, 7
        %v425 = vadd.s32 %v424, 8
        %v426 = vadd.s32 %v424, 16
        %v427 = vadd.s32 %v424, 24
        %v428 = vadd.s32 %v424, 32
        %v429 = vadd.s32 %v424, 40
        %v430 = vadd.s32 %v424, 48
        %v431 = vadd.s32 %v424, 56
        %v432 = vadd.s32 %v424, 64
        %v433 = vadd.s32 %v424, 72
        %v434 = vadd.s32 %v424, 80
        %v435 = vadd.s32 %v424, 88
        %v436 = vadd.s32 %v424, 96
        %v437 = vadd.s32 %v424, 104
        %v438 = vadd.s32 %v424, 112
        %v439 = vadd.s32 %v424, 120
        %v440 = vadd.s32 %v424, 128
        %v441 = vadd.s32 %v424, 136
        %v442 = vadd.s32 %v424, 144
        %v443 = vadd.s32 %v424, 152
        %v444 = vadd.s32 %v424, 160
        %v445 = vadd.s32 %v424, 168
        %v446 = vadd.s32 %v424, 176
        %v447 = vadd.s32 %v424, 184
        %v448 = vadd.s32 %v424, 192
        %v449 = vadd.s32 %v424, 200
        %v450 = vadd.s32 %v424, 208
        %v451 = vadd.s32 %v424, 216
        %v452 = vadd.s32 %v424, 224
        %v453 = vadd.s32 %v424, 232
        %v454 = vadd.s32 %v424, 240
        %v455 = vadd.s32 %v424, 248
        %v456 = vlaneseq
        %v457 = vand.u32 %v456, 127
        %v458 = vadd.s32 %v457, 128
        %v459 = vadd.s32 %v425, 16
        %v460 = vadd.s32 %v426, 16
        %v461 = vadd.s32 %v427, 16
        %v462 = vadd.s32 %v428, 16
        %v463 = vadd.s32 %v429, 16
        %v464 = vadd.s32 %v430, 16
        %v465 = vadd.s32 %v431, 16
        %v466 = vadd.s32 %v432, 16
        %v467 = vadd.s32 %v433, 16
        %v468 = vadd.s32 %v434, 16
        %v469 = vadd.s32 %v435, 16
        %v470 = vadd.s32 %v436, 16
        %v471 = vadd.s32 %v437, 16
        %v472 = vadd.s32 %v438, 16
        %v473 = vadd.s32 %v439, 16
        %v474 = vadd.s32 %v440, 16
        %v475 = vadd.s32 %v441, 16
        %v476 = vadd.s32 %v442, 16
        %v477 = vadd.s32 %v443, 16
        %v478 = vadd.s32 %v444, 16
        %v479 = vadd.s32 %v445, 16
        %v480 = vadd.s32 %v446, 16
        %v481 = vadd.s32 %v447, 16
        %v482 = vadd.s32 %v448, 16
        %v483 = vadd.s32 %v449, 16
        %v484 = vadd.s32 %v450, 16
        %v485 = vadd.s32 %v451, 16
        %v486 = vadd.s32 %v452, 16
        %v487 = vadd.s32 %v453, 16
        %v488 = vadd.s32 %v454, 16
        %v489 = vadd.s32 %v455, 16
        %vm490 = vcmp.eq.s32.totalorder %v457, %v426
        %vm491 = vcmp.eq.s32.totalorder %v458, %v426
        %vm492 = vcmp.eq.s32.totalorder %v457, %v459
        %vm493 = vcmp.eq.s32.totalorder %v458, %v459
        %vm494 = vcmp.eq.s32.totalorder %v457, %v460
        %vm495 = vcmp.eq.s32.totalorder %v458, %v460
        %vm496 = vcmp.eq.s32.totalorder %v457, %v461
        %vm497 = vcmp.eq.s32.totalorder %v458, %v461
        %vm498 = vcmp.eq.s32.totalorder %v457, %v462
        %vm499 = vcmp.eq.s32.totalorder %v458, %v462
        %vm500 = vcmp.eq.s32.totalorder %v457, %v463
        %vm501 = vcmp.eq.s32.totalorder %v458, %v463
        %vm502 = vcmp.eq.s32.totalorder %v457, %v464
        %vm503 = vcmp.eq.s32.totalorder %v458, %v464
        %vm504 = vcmp.eq.s32.totalorder %v457, %v465
        %vm505 = vcmp.eq.s32.totalorder %v458, %v465
        %vm506 = vcmp.eq.s32.totalorder %v457, %v466
        %vm507 = vcmp.eq.s32.totalorder %v458, %v466
        %vm508 = vcmp.eq.s32.totalorder %v457, %v467
        %vm509 = vcmp.eq.s32.totalorder %v458, %v467
        %vm510 = vcmp.eq.s32.totalorder %v457, %v468
        %vm511 = vcmp.eq.s32.totalorder %v458, %v468
        %vm512 = vcmp.eq.s32.totalorder %v457, %v469
        %vm513 = vcmp.eq.s32.totalorder %v458, %v469
        %vm514 = vcmp.eq.s32.totalorder %v457, %v470
        %vm515 = vcmp.eq.s32.totalorder %v458, %v470
        %vm516 = vcmp.eq.s32.totalorder %v457, %v471
        %vm517 = vcmp.eq.s32.totalorder %v458, %v471
        %vm518 = vcmp.eq.s32.totalorder %v457, %v472
        %vm519 = vcmp.eq.s32.totalorder %v458, %v472
        %vm520 = vcmp.eq.s32.totalorder %v457, %v473
        %vm521 = vcmp.eq.s32.totalorder %v458, %v473
        %vm522 = vcmp.eq.s32.totalorder %v457, %v474
        %vm523 = vcmp.eq.s32.totalorder %v458, %v474
        %vm524 = vcmp.eq.s32.totalorder %v457, %v475
        %vm525 = vcmp.eq.s32.totalorder %v458, %v475
        %vm526 = vcmp.eq.s32.totalorder %v457, %v476
        %vm527 = vcmp.eq.s32.totalorder %v458, %v476
        %vm528 = vcmp.eq.s32.totalorder %v457, %v477
        %vm529 = vcmp.eq.s32.totalorder %v458, %v477
        %vm530 = vcmp.eq.s32.totalorder %v457, %v478
        %vm531 = vcmp.eq.s32.totalorder %v458, %v478
        %vm532 = vcmp.eq.s32.totalorder %v457, %v479
        %vm533 = vcmp.eq.s32.totalorder %v458, %v479
        %vm534 = vcmp.eq.s32.totalorder %v457, %v480
        %vm535 = vcmp.eq.s32.totalorder %v458, %v480
        %vm536 = vcmp.eq.s32.totalorder %v457, %v481
        %vm537 = vcmp.eq.s32.totalorder %v458, %v481
        %vm538 = vcmp.eq.s32.totalorder %v457, %v482
        %vm539 = vcmp.eq.s32.totalorder %v458, %v482
        %vm540 = vcmp.eq.s32.totalorder %v457, %v483
        %vm541 = vcmp.eq.s32.totalorder %v458, %v483
        %vm542 = vcmp.eq.s32.totalorder %v457, %v484
        %vm543 = vcmp.eq.s32.totalorder %v458, %v484
        %vm544 = vcmp.eq.s32.totalorder %v457, %v485
        %vm545 = vcmp.eq.s32.totalorder %v458, %v485
        %vm546 = vcmp.eq.s32.totalorder %v457, %v486
        %vm547 = vcmp.eq.s32.totalorder %v458, %v486
        %vm548 = vcmp.eq.s32.totalorder %v457, %v487
        %vm549 = vcmp.eq.s32.totalorder %v458, %v487
        %vm550 = vcmp.eq.s32.totalorder %v457, %v488
        %vm551 = vcmp.eq.s32.totalorder %v458, %v488
        %vm552 = vcmp.eq.s32.totalorder %v457, %v489
        %vm553 = vcmp.eq.s32.totalorder %v458, %v489
        %v554 = vsel %vm490, 1, 0
        %v555 = vsel %vm491, 1, 0
        %v556 = vsel %vm492, 1, 0
        %v557 = vsel %vm493, 1, 0
        %v558 = vsel %vm494, 1, 0
        %v559 = vsel %vm495, 1, 0
        %v560 = vsel %vm496, 1, 0
        %v561 = vsel %vm497, 1, 0
        %v562 = vsel %vm498, 1, 0
        %v563 = vsel %vm499, 1, 0
        %v564 = vsel %vm500, 1, 0
        %v565 = vsel %vm501, 1, 0
        %v566 = vsel %vm502, 1, 0
        %v567 = vsel %vm503, 1, 0
        %v568 = vsel %vm504, 1, 0
        %v569 = vsel %vm505, 1, 0
        %v570 = vsel %vm506, 1, 0
        %v571 = vsel %vm507, 1, 0
        %v572 = vsel %vm508, 1, 0
        %v573 = vsel %vm509, 1, 0
        %v574 = vsel %vm510, 1, 0
        %v575 = vsel %vm511, 1, 0
        %v576 = vsel %vm512, 1, 0
        %v577 = vsel %vm513, 1, 0
        %v578 = vsel %vm514, 1, 0
        %v579 = vsel %vm515, 1, 0
        %v580 = vsel %vm516, 1, 0
        %v581 = vsel %vm517, 1, 0
        %v582 = vsel %vm518, 1, 0
        %v583 = vsel %vm519, 1, 0
        %v584 = vsel %vm520, 1, 0
        %v585 = vsel %vm521, 1, 0
        %v586 = vsel %vm522, 1, 0
        %v587 = vsel %vm523, 1, 0
        %v588 = vsel %vm524, 1, 0
        %v589 = vsel %vm525, 1, 0
        %v590 = vsel %vm526, 1, 0
        %v591 = vsel %vm527, 1, 0
        %v592 = vsel %vm528, 1, 0
        %v593 = vsel %vm529, 1, 0
        %v594 = vsel %vm530, 1, 0
        %v595 = vsel %vm531, 1, 0
        %v596 = vsel %vm532, 1, 0
        %v597 = vsel %vm533, 1, 0
        %v598 = vsel %vm534, 1, 0
        %v599 = vsel %vm535, 1, 0
        %v600 = vsel %vm536, 1, 0
        %v601 = vsel %vm537, 1, 0
        %v602 = vsel %vm538, 1, 0
        %v603 = vsel %vm539, 1, 0
        %v604 = vsel %vm540, 1, 0
        %v605 = vsel %vm541, 1, 0
        %v606 = vsel %vm542, 1, 0
        %v607 = vsel %vm543, 1, 0
        %v608 = vsel %vm544, 1, 0
        %v609 = vsel %vm545, 1, 0
        %v610 = vsel %vm546, 1, 0
        %v611 = vsel %vm547, 1, 0
        %v612 = vsel %vm548, 1, 0
        %v613 = vsel %vm549, 1, 0
        %v614 = vsel %vm550, 1, 0
        %v615 = vsel %vm551, 1, 0
        %v616 = vsel %vm552, 1, 0
        %v617 = vsel %vm553, 1, 0
        %v618 = vcvt.s32.f32 %v554
        %v619 = vcvt.s32.f32 %v555
        %v620 = vcvt.s32.f32 %v556
        %v621 = vcvt.s32.f32 %v557
        %v622 = vcvt.s32.f32 %v558
        %v623 = vcvt.s32.f32 %v559
        %v624 = vcvt.s32.f32 %v560
        %v625 = vcvt.s32.f32 %v561
        %v626 = vcvt.s32.f32 %v562
        %v627 = vcvt.s32.f32 %v563
        %v628 = vcvt.s32.f32 %v564
        %v629 = vcvt.s32.f32 %v565
        %v630 = vcvt.s32.f32 %v566
        %v631 = vcvt.s32.f32 %v567
        %v632 = vcvt.s32.f32 %v568
        %v633 = vcvt.s32.f32 %v569
        %v634 = vcvt.s32.f32 %v570
        %v635 = vcvt.s32.f32 %v571
        %v636 = vcvt.s32.f32 %v572
        %v637 = vcvt.s32.f32 %v573
        %v638 = vcvt.s32.f32 %v574
        %v639 = vcvt.s32.f32 %v575
        %v640 = vcvt.s32.f32 %v576
        %v641 = vcvt.s32.f32 %v577
        %v642 = vcvt.s32.f32 %v578
        %v643 = vcvt.s32.f32 %v579
        %v644 = vcvt.s32.f32 %v580
        %v645 = vcvt.s32.f32 %v581
        %v646 = vcvt.s32.f32 %v582
        %v647 = vcvt.s32.f32 %v583
        %v648 = vcvt.s32.f32 %v584
        %v649 = vcvt.s32.f32 %v585
        %v650 = vcvt.s32.f32 %v586
        %v651 = vcvt.s32.f32 %v587
        %v652 = vcvt.s32.f32 %v588
        %v653 = vcvt.s32.f32 %v589
        %v654 = vcvt.s32.f32 %v590
        %v655 = vcvt.s32.f32 %v591
        %v656 = vcvt.s32.f32 %v592
        %v657 = vcvt.s32.f32 %v593
        %v658 = vcvt.s32.f32 %v594
        %v659 = vcvt.s32.f32 %v595
        %v660 = vcvt.s32.f32 %v596
        %v661 = vcvt.s32.f32 %v597
        %v662 = vcvt.s32.f32 %v598
        %v663 = vcvt.s32.f32 %v599
        %v664 = vcvt.s32.f32 %v600
        %v665 = vcvt.s32.f32 %v601
        %v666 = vcvt.s32.f32 %v602
        %v667 = vcvt.s32.f32 %v603
        %v668 = vcvt.s32.f32 %v604
        %v669 = vcvt.s32.f32 %v605
        %v670 = vcvt.s32.f32 %v606
        %v671 = vcvt.s32.f32 %v607
        %v672 = vcvt.s32.f32 %v608
        %v673 = vcvt.s32.f32 %v609
        %v674 = vcvt.s32.f32 %v610
        %v675 = vcvt.s32.f32 %v611
        %v676 = vcvt.s32.f32 %v612
        %v677 = vcvt.s32.f32 %v613
        %v678 = vcvt.s32.f32 %v614
        %v679 = vcvt.s32.f32 %v615
        %v680 = vcvt.s32.f32 %v616
        %v681 = vcvt.s32.f32 %v617
        %v682 = vsub.s32 %v424, 16
        %v683 = vsub.s32 %v425, 16
        %v684 = vsub.s32 %v427, 16
        %v685 = vsub.s32 %v428, 16
        %v686 = vsub.s32 %v429, 16
        %v687 = vsub.s32 %v430, 16
        %v688 = vsub.s32 %v431, 16
        %v689 = vsub.s32 %v432, 16
        %v690 = vsub.s32 %v433, 16
        %v691 = vsub.s32 %v434, 16
        %v692 = vsub.s32 %v435, 16
        %v693 = vsub.s32 %v436, 16
        %v694 = vsub.s32 %v437, 16
        %v695 = vsub.s32 %v438, 16
        %v696 = vsub.s32 %v439, 16
        %v697 = vsub.s32 %v440, 16
        %v698 = vsub.s32 %v441, 16
        %v699 = vsub.s32 %v442, 16
        %v700 = vsub.s32 %v443, 16
        %v701 = vsub.s32 %v444, 16
        %v702 = vsub.s32 %v445, 16
        %v703 = vsub.s32 %v446, 16
        %v704 = vsub.s32 %v447, 16
        %v705 = vsub.s32 %v448, 16
        %v706 = vsub.s32 %v449, 16
        %v707 = vsub.s32 %v450, 16
        %v708 = vsub.s32 %v451, 16
        %v709 = vsub.s32 %v452, 16
        %v710 = vsub.s32 %v453, 16
        %v711 = vsub.s32 %v454, 16
        %v712 = vsub.s32 %v455, 16
        %vm713 = vcmp.eq.s32.totalorder %v457, %v682
        %vm714 = vcmp.eq.s32.totalorder %v458, %v682
        %vm715 = vcmp.eq.s32.totalorder %v457, %v683
        %vm716 = vcmp.eq.s32.totalorder %v458, %v683
        %vm717 = vcmp.eq.s32.totalorder %v457, %v424
        %vm718 = vcmp.eq.s32.totalorder %v458, %v424
        %vm719 = vcmp.eq.s32.totalorder %v457, %v684
        %vm720 = vcmp.eq.s32.totalorder %v458, %v684
        %vm721 = vcmp.eq.s32.totalorder %v457, %v685
        %vm722 = vcmp.eq.s32.totalorder %v458, %v685
        %vm723 = vcmp.eq.s32.totalorder %v457, %v686
        %vm724 = vcmp.eq.s32.totalorder %v458, %v686
        %vm725 = vcmp.eq.s32.totalorder %v457, %v687
        %vm726 = vcmp.eq.s32.totalorder %v458, %v687
        %vm727 = vcmp.eq.s32.totalorder %v457, %v688
        %vm728 = vcmp.eq.s32.totalorder %v458, %v688
        %vm729 = vcmp.eq.s32.totalorder %v457, %v689
        %vm730 = vcmp.eq.s32.totalorder %v458, %v689
        %vm731 = vcmp.eq.s32.totalorder %v457, %v690
        %vm732 = vcmp.eq.s32.totalorder %v458, %v690
        %vm733 = vcmp.eq.s32.totalorder %v457, %v691
        %vm734 = vcmp.eq.s32.totalorder %v458, %v691
        %vm735 = vcmp.eq.s32.totalorder %v457, %v692
        %vm736 = vcmp.eq.s32.totalorder %v458, %v692
        %vm737 = vcmp.eq.s32.totalorder %v457, %v693
        %vm738 = vcmp.eq.s32.totalorder %v458, %v693
        %vm739 = vcmp.eq.s32.totalorder %v457, %v694
        %vm740 = vcmp.eq.s32.totalorder %v458, %v694
        %vm741 = vcmp.eq.s32.totalorder %v457, %v695
        %vm742 = vcmp.eq.s32.totalorder %v458, %v695
        %vm743 = vcmp.eq.s32.totalorder %v457, %v696
        %vm744 = vcmp.eq.s32.totalorder %v458, %v696
        %vm745 = vcmp.eq.s32.totalorder %v457, %v697
        %vm746 = vcmp.eq.s32.totalorder %v458, %v697
        %vm747 = vcmp.eq.s32.totalorder %v457, %v698
        %vm748 = vcmp.eq.s32.totalorder %v458, %v698
        %vm749 = vcmp.eq.s32.totalorder %v457, %v699
        %vm750 = vcmp.eq.s32.totalorder %v458, %v699
        %vm751 = vcmp.eq.s32.totalorder %v457, %v700
        %vm752 = vcmp.eq.s32.totalorder %v458, %v700
        %vm753 = vcmp.eq.s32.totalorder %v457, %v701
        %vm754 = vcmp.eq.s32.totalorder %v458, %v701
        %vm755 = vcmp.eq.s32.totalorder %v457, %v702
        %vm756 = vcmp.eq.s32.totalorder %v458, %v702
        %vm757 = vcmp.eq.s32.totalorder %v457, %v703
        %vm758 = vcmp.eq.s32.totalorder %v458, %v703
        %vm759 = vcmp.eq.s32.totalorder %v457, %v704
        %vm760 = vcmp.eq.s32.totalorder %v458, %v704
        %vm761 = vcmp.eq.s32.totalorder %v457, %v705
        %vm762 = vcmp.eq.s32.totalorder %v458, %v705
        %vm763 = vcmp.eq.s32.totalorder %v457, %v706
        %vm764 = vcmp.eq.s32.totalorder %v458, %v706
        %vm765 = vcmp.eq.s32.totalorder %v457, %v707
        %vm766 = vcmp.eq.s32.totalorder %v458, %v707
        %vm767 = vcmp.eq.s32.totalorder %v457, %v708
        %vm768 = vcmp.eq.s32.totalorder %v458, %v708
        %vm769 = vcmp.eq.s32.totalorder %v457, %v709
        %vm770 = vcmp.eq.s32.totalorder %v458, %v709
        %vm771 = vcmp.eq.s32.totalorder %v457, %v710
        %vm772 = vcmp.eq.s32.totalorder %v458, %v710
        %vm773 = vcmp.eq.s32.totalorder %v457, %v711
        %vm774 = vcmp.eq.s32.totalorder %v458, %v711
        %vm775 = vcmp.eq.s32.totalorder %v457, %v712
        %vm776 = vcmp.eq.s32.totalorder %v458, %v712
        %v777 = vsel %vm713, 1, 0
        %v778 = vsel %vm714, 1, 0
        %v779 = vsel %vm715, 1, 0
        %v780 = vsel %vm716, 1, 0
        %v781 = vsel %vm717, 1, 0
        %v782 = vsel %vm718, 1, 0
        %v783 = vsel %vm719, 1, 0
        %v784 = vsel %vm720, 1, 0
        %v785 = vsel %vm721, 1, 0
        %v786 = vsel %vm722, 1, 0
        %v787 = vsel %vm723, 1, 0
        %v788 = vsel %vm724, 1, 0
        %v789 = vsel %vm725, 1, 0
        %v790 = vsel %vm726, 1, 0
        %v791 = vsel %vm727, 1, 0
        %v792 = vsel %vm728, 1, 0
        %v793 = vsel %vm729, 1, 0
        %v794 = vsel %vm730, 1, 0
        %v795 = vsel %vm731, 1, 0
        %v796 = vsel %vm732, 1, 0
        %v797 = vsel %vm733, 1, 0
        %v798 = vsel %vm734, 1, 0
        %v799 = vsel %vm735, 1, 0
        %v800 = vsel %vm736, 1, 0
        %v801 = vsel %vm737, 1, 0
        %v802 = vsel %vm738, 1, 0
        %v803 = vsel %vm739, 1, 0
        %v804 = vsel %vm740, 1, 0
        %v805 = vsel %vm741, 1, 0
        %v806 = vsel %vm742, 1, 0
        %v807 = vsel %vm743, 1, 0
        %v808 = vsel %vm744, 1, 0
        %v809 = vsel %vm745, 1, 0
        %v810 = vsel %vm746, 1, 0
        %v811 = vsel %vm747, 1, 0
        %v812 = vsel %vm748, 1, 0
        %v813 = vsel %vm749, 1, 0
        %v814 = vsel %vm750, 1, 0
        %v815 = vsel %vm751, 1, 0
        %v816 = vsel %vm752, 1, 0
        %v817 = vsel %vm753, 1, 0
        %v818 = vsel %vm754, 1, 0
        %v819 = vsel %vm755, 1, 0
        %v820 = vsel %vm756, 1, 0
        %v821 = vsel %vm757, 1, 0
        %v822 = vsel %vm758, 1, 0
        %v823 = vsel %vm759, 1, 0
        %v824 = vsel %vm760, 1, 0
        %v825 = vsel %vm761, 1, 0
        %v826 = vsel %vm762, 1, 0
        %v827 = vsel %vm763, 1, 0
        %v828 = vsel %vm764, 1, 0
        %v829 = vsel %vm765, 1, 0
        %v830 = vsel %vm766, 1, 0
        %v831 = vsel %vm767, 1, 0
        %v832 = vsel %vm768, 1, 0
        %v833 = vsel %vm769, 1, 0
        %v834 = vsel %vm770, 1, 0
        %v835 = vsel %vm771, 1, 0
        %v836 = vsel %vm772, 1, 0
        %v837 = vsel %vm773, 1, 0
        %v838 = vsel %vm774, 1, 0
        %v839 = vsel %vm775, 1, 0
        %v840 = vsel %vm776, 1, 0
        %v841 = vcvt.s32.f32 %v777
        %v842 = vcvt.s32.f32 %v778
        %v843 = vcvt.s32.f32 %v779
        %v844 = vcvt.s32.f32 %v780
        %v845 = vcvt.s32.f32 %v781
        %v846 = vcvt.s32.f32 %v782
        %v847 = vcvt.s32.f32 %v783
        %v848 = vcvt.s32.f32 %v784
        %v849 = vcvt.s32.f32 %v785
        %v850 = vcvt.s32.f32 %v786
        %v851 = vcvt.s32.f32 %v787
        %v852 = vcvt.s32.f32 %v788
        %v853 = vcvt.s32.f32 %v789
        %v854 = vcvt.s32.f32 %v790
        %v855 = vcvt.s32.f32 %v791
        %v856 = vcvt.s32.f32 %v792
        %v857 = vcvt.s32.f32 %v793
        %v858 = vcvt.s32.f32 %v794
        %v859 = vcvt.s32.f32 %v795
        %v860 = vcvt.s32.f32 %v796
        %v861 = vcvt.s32.f32 %v797
        %v862 = vcvt.s32.f32 %v798
        %v863 = vcvt.s32.f32 %v799
        %v864 = vcvt.s32.f32 %v800
        %v865 = vcvt.s32.f32 %v801
        %v866 = vcvt.s32.f32 %v802
        %v867 = vcvt.s32.f32 %v803
        %v868 = vcvt.s32.f32 %v804
        %v869 = vcvt.s32.f32 %v805
        %v870 = vcvt.s32.f32 %v806
        %v871 = vcvt.s32.f32 %v807
        %v872 = vcvt.s32.f32 %v808
        %v873 = vcvt.s32.f32 %v809
        %v874 = vcvt.s32.f32 %v810
        %v875 = vcvt.s32.f32 %v811
        %v876 = vcvt.s32.f32 %v812
        %v877 = vcvt.s32.f32 %v813
        %v878 = vcvt.s32.f32 %v814
        %v879 = vcvt.s32.f32 %v815
        %v880 = vcvt.s32.f32 %v816
        %v881 = vcvt.s32.f32 %v817
        %v882 = vcvt.s32.f32 %v818
        %v883 = vcvt.s32.f32 %v819
        %v884 = vcvt.s32.f32 %v820
        %v885 = vcvt.s32.f32 %v821
        %v886 = vcvt.s32.f32 %v822
        %v887 = vcvt.s32.f32 %v823
        %v888 = vcvt.s32.f32 %v824
        %v889 = vcvt.s32.f32 %v825
        %v890 = vcvt.s32.f32 %v826
        %v891 = vcvt.s32.f32 %v827
        %v892 = vcvt.s32.f32 %v828
        %v893 = vcvt.s32.f32 %v829
        %v894 = vcvt.s32.f32 %v830
        %v895 = vcvt.s32.f32 %v831
        %v896 = vcvt.s32.f32 %v832
        %v897 = vcvt.s32.f32 %v833
        %v898 = vcvt.s32.f32 %v834
        %v899 = vcvt.s32.f32 %v835
        %v900 = vcvt.s32.f32 %v836
        %v901 = vcvt.s32.f32 %v837
        %v902 = vcvt.s32.f32 %v838
        %v903 = vcvt.s32.f32 %v839
        %v904 = vcvt.s32.f32 %v840
        %v905 = vld [vmem:[%s3] sm:$0xff]
        %906 = vmatprep.subr.mxu0 %v649
        %907 = vmatpush1.msra.mxu0 %v648
        %908 = vmatprep.subr.mxu0 %v647
        %909 = vmatpush1.msra.mxu0 %v646
        %910 = vmatprep.subr.mxu0 %v645
        %911 = vmatpush1.msra.mxu0 %v644
        %912 = vmatprep.subr.mxu0 %v643
        %913 = vmatpush1.msra.mxu0 %v642
        %914 = vmatprep.subr.mxu0 %v641
        %915 = vmatpush1.msra.mxu0 %v640
        %916 = vmatprep.subr.mxu0 %v639
        %917 = vmatpush1.msra.mxu0 %v638
        %918 = vmatprep.subr.mxu0 %v637
        %919 = vmatpush1.msra.mxu0 %v636
        %920 = vmatprep.subr.mxu0 %v635
        %921 = vmatpush1.msra.mxu0 %v634
        %922 = vmatprep.subr.mxu0 %v633
        %923 = vmatpush1.msra.mxu0 %v632
        %924 = vmatprep.subr.mxu0 %v631
        %925 = vmatpush1.msra.mxu0 %v630
        %926 = vmatprep.subr.mxu0 %v629
        %927 = vmatpush1.msra.mxu0 %v628
        %928 = vmatprep.subr.mxu0 %v627
        %929 = vmatpush1.msra.mxu0 %v626
        %930 = vmatprep.subr.mxu0 %v625
        %931 = vmatpush1.msra.mxu0 %v624
        %932 = vmatprep.subr.mxu0 %v623
        %933 = vmatpush1.msra.mxu0 %v622
        %934 = vmatprep.subr.mxu0 %v621
        %935 = vmatpush1.msra.mxu0 %v620
        %936 = vmatprep.subr.mxu0 %v619
        %937 = vmatpush1.msra.mxu0 %v618
        %938 = vmatprep.subr.mxu0 %v681
        %939 = vmatpush2.msra.mxu0 %v680
        %940 = vmatprep.subr.mxu0 %v679
        %941 = vmatpush2.msra.mxu0 %v678
        %942 = vmatprep.subr.mxu0 %v677
        %943 = vmatpush2.msra.mxu0 %v676
        %944 = vmatprep.subr.mxu0 %v675
        %945 = vmatpush2.msra.mxu0 %v674
        %946 = vmatprep.subr.mxu0 %v673
        %947 = vmatpush2.msra.mxu0 %v672
        %948 = vmatprep.subr.mxu0 %v671
        %949 = vmatpush2.msra.mxu0 %v670
        %950 = vmatprep.subr.mxu0 %v669
        %951 = vmatpush2.msra.mxu0 %v668
        %952 = vmatprep.subr.mxu0 %v667
        %953 = vmatpush2.msra.mxu0 %v666
        %954 = vmatprep.subr.mxu0 %v665
        %955 = vmatpush2.msra.mxu0 %v664
        %956 = vmatprep.subr.mxu0 %v663
        %957 = vmatpush2.msra.mxu0 %v662
        %958 = vmatprep.subr.mxu0 %v661
        %959 = vmatpush2.msra.mxu0 %v660
        %960 = vmatprep.subr.mxu0 %v659
        %961 = vmatpush2.msra.mxu0 %v658
        %962 = vmatprep.subr.mxu0 %v657
        %963 = vmatpush2.msra.mxu0 %v656
        %964 = vmatprep.subr.mxu0 %v655
        %965 = vmatpush2.msra.mxu0 %v654
        %966 = vmatprep.subr.mxu0 %v653
        %967 = vmatpush2.msra.mxu0 %v652
        %968 = vmatprep.subr.mxu0 %v651
        %969 = vmatpush2.msra.mxu0 %v650
        %970 = vmatprep.mubr.f32.mxu0 %v422
        %971 = vmatmul.mubr.f32.gmra.mxu0 %v421
        %v972 = vpop.f32.mrf.mxu0
        %v973 = vadd.f32 0.0, %v972
        %v974 = vpop.f32.mrf.mxu0
        %v975 = vadd.f32 0.0, %v974
        %976 = vdwg.mxu0
        %s977 = scalar_lea.vmem %s3, 8
        %v978 = vld [vmem:[%s977] sm:$0xff]
        %vm979 = vcmask 64512
        %v981 = vsel %vm979, %v978, 0
        %983 = vmatprep.subr.mxu0 0.0
        %984 = vmatpush1.msra.mxu0 0.0
        %985 = vmatprep.subr.mxu0 0.0
        %986 = vmatpush1.msra.mxu0 0.0
        %987 = vmatprep.subr.mxu0 0.0
        %988 = vmatpush1.msra.mxu0 0.0
        %989 = vmatprep.subr.mxu0 0.0
        %990 = vmatpush1.msra.mxu0 0.0
        %991 = vmatprep.subr.mxu0 0.0
        %992 = vmatpush1.msra.mxu0 0.0
        %993 = vmatprep.subr.mxu0 0.0
        %994 = vmatpush1.msra.mxu0 0.0
        %995 = vmatprep.subr.mxu0 0.0
        %996 = vmatpush1.msra.mxu0 0.0
        %997 = vmatprep.subr.mxu0 0.0
        %998 = vmatpush1.msra.mxu0 0.0
        %999 = vmatprep.subr.mxu0 0.0
        %1000 = vmatpush1.msra.mxu0 0.0
        %1001 = vmatprep.subr.mxu0 0.0
        %1002 = vmatpush1.msra.mxu0 0.0
        %1003 = vmatprep.subr.mxu0 0.0
        %1004 = vmatpush1.msra.mxu0 0.0
        %1005 = vmatprep.subr.mxu0 0.0
        %1006 = vmatpush1.msra.mxu0 0.0
        %1007 = vmatprep.subr.mxu0 0.0
        %1008 = vmatpush1.msra.mxu0 0.0
        %1009 = vmatprep.subr.mxu0 0.0
        %1010 = vmatpush1.msra.mxu0 0.0
        %1011 = vmatprep.subr.mxu0 0.0
        %1012 = vmatpush1.msra.mxu0 0.0
        %1013 = vmatprep.subr.mxu0 %v422
        %1014 = vmatpush1.msra.mxu0 %v421
        %1015 = vmatprep.subr.mxu0 0.0
        %1016 = vmatpush2.msra.mxu0 0.0
        %1017 = vmatprep.subr.mxu0 0.0
        %1018 = vmatpush2.msra.mxu0 0.0
        %1019 = vmatprep.subr.mxu0 0.0
        %1020 = vmatpush2.msra.mxu0 0.0
        %1021 = vmatprep.subr.mxu0 0.0
        %1022 = vmatpush2.msra.mxu0 0.0
        %1023 = vmatprep.subr.mxu0 0.0
        %1024 = vmatpush2.msra.mxu0 0.0
        %1025 = vmatprep.subr.mxu0 0.0
        %1026 = vmatpush2.msra.mxu0 0.0
        %1027 = vmatprep.subr.mxu0 0.0
        %1028 = vmatpush2.msra.mxu0 0.0
        %1029 = vmatprep.subr.mxu0 0.0
        %1030 = vmatpush2.msra.mxu0 0.0
        %1031 = vmatprep.subr.mxu0 0.0
        %1032 = vmatpush2.msra.mxu0 0.0
        %1033 = vmatprep.subr.mxu0 0.0
        %1034 = vmatpush2.msra.mxu0 0.0
        %1035 = vmatprep.subr.mxu0 0.0
        %1036 = vmatpush2.msra.mxu0 0.0
        %1037 = vmatprep.subr.mxu0 0.0
        %1038 = vmatpush2.msra.mxu0 0.0
        %1039 = vmatprep.subr.mxu0 0.0
        %1040 = vmatpush2.msra.mxu0 0.0
        %1041 = vmatprep.subr.mxu0 0.0
        %1042 = vmatpush2.msra.mxu0 0.0
        %1043 = vmatprep.subr.mxu0 0.0
        %1044 = vmatpush2.msra.mxu0 0.0
        %1045 = vmatprep.subr.mxu0 0.0
        %1046 = vmatpush2.msra.mxu0 0.0
        %1047 = vmatprep.mubr.f32.mxu0 0.0
        %1048 = vmatmul.mubr.f32.gmra.mxu0 %v981
        %v1049 = vpop.f32.mrf.mxu0
        %v1050 = vadd.f32 0.0, %v1049
        %v1051 = vpop.f32.mrf.mxu0
        %v1052 = vadd.f32 0.0, %v1051
        %1053 = vdwg.mxu0
        %v1055 = vsel %vm979, %v905, 0
        %1057 = vmatprep.subr.mxu0 0.0
        %1058 = vmatpush1.msra.mxu0 0.0
        %1059 = vmatprep.subr.mxu0 0.0
        %1060 = vmatpush1.msra.mxu0 0.0
        %1061 = vmatprep.subr.mxu0 0.0
        %1062 = vmatpush1.msra.mxu0 0.0
        %1063 = vmatprep.subr.mxu0 0.0
        %1064 = vmatpush1.msra.mxu0 0.0
        %1065 = vmatprep.subr.mxu0 0.0
        %1066 = vmatpush1.msra.mxu0 0.0
        %1067 = vmatprep.subr.mxu0 0.0
        %1068 = vmatpush1.msra.mxu0 0.0
        %1069 = vmatprep.subr.mxu0 0.0
        %1070 = vmatpush1.msra.mxu0 0.0
        %1071 = vmatprep.subr.mxu0 0.0
        %1072 = vmatpush1.msra.mxu0 0.0
        %1073 = vmatprep.subr.mxu0 0.0
        %1074 = vmatpush1.msra.mxu0 0.0
        %1075 = vmatprep.subr.mxu0 0.0
        %1076 = vmatpush1.msra.mxu0 0.0
        %1077 = vmatprep.subr.mxu0 0.0
        %1078 = vmatpush1.msra.mxu0 0.0
        %1079 = vmatprep.subr.mxu0 0.0
        %1080 = vmatpush1.msra.mxu0 0.0
        %1081 = vmatprep.subr.mxu0 0.0
        %1082 = vmatpush1.msra.mxu0 0.0
        %1083 = vmatprep.subr.mxu0 0.0
        %1084 = vmatpush1.msra.mxu0 0.0
        %1085 = vmatprep.subr.mxu0 0.0
        %1086 = vmatpush1.msra.mxu0 0.0
        %1087 = vmatprep.subr.mxu0 %v975
        %1088 = vmatpush1.msra.mxu0 %v973
        %1089 = vmatprep.subr.mxu0 0.0
        %1090 = vmatpush2.msra.mxu0 0.0
        %1091 = vmatprep.subr.mxu0 0.0
        %1092 = vmatpush2.msra.mxu0 0.0
        %1093 = vmatprep.subr.mxu0 0.0
        %1094 = vmatpush2.msra.mxu0 0.0
        %1095 = vmatprep.subr.mxu0 0.0
        %1096 = vmatpush2.msra.mxu0 0.0
        %1097 = vmatprep.subr.mxu0 0.0
        %1098 = vmatpush2.msra.mxu0 0.0
        %1099 = vmatprep.subr.mxu0 0.0
        %1100 = vmatpush2.msra.mxu0 0.0
        %1101 = vmatprep.subr.mxu0 0.0
        %1102 = vmatpush2.msra.mxu0 0.0
        %1103 = vmatprep.subr.mxu0 0.0
        %1104 = vmatpush2.msra.mxu0 0.0
        %1105 = vmatprep.subr.mxu0 0.0
        %1106 = vmatpush2.msra.mxu0 0.0
        %1107 = vmatprep.subr.mxu0 0.0
        %1108 = vmatpush2.msra.mxu0 0.0
        %1109 = vmatprep.subr.mxu0 0.0
        %1110 = vmatpush2.msra.mxu0 0.0
        %1111 = vmatprep.subr.mxu0 0.0
        %1112 = vmatpush2.msra.mxu0 0.0
        %1113 = vmatprep.subr.mxu0 0.0
        %1114 = vmatpush2.msra.mxu0 0.0
        %1115 = vmatprep.subr.mxu0 0.0
        %1116 = vmatpush2.msra.mxu0 0.0
        %1117 = vmatprep.subr.mxu0 0.0
        %1118 = vmatpush2.msra.mxu0 0.0
        %1119 = vmatprep.subr.mxu0 0.0
        %1120 = vmatpush2.msra.mxu0 0.0
        %1121 = vmatprep.mubr.f32.mxu0 0.0
        %1122 = vmatmul.mubr.f32.gmra.mxu0 %v1055
        %v1123 = vpop.f32.mrf.mxu0
        %v1124 = vadd.f32 %v1050, %v1123
        %v1125 = vpop.f32.mrf.mxu0
        %v1126 = vadd.f32 %v1052, %v1125
        %1127 = vdwg.mxu0
        %s1128 = scalar_lea.vmem %s3, 16
        %v1129 = vld [vmem:[%s1128] sm:$0xff]
        %1130 = vmatprep.subr.mxu0 %v872
        %1131 = vmatpush1.msra.mxu0 %v871
        %1132 = vmatprep.subr.mxu0 %v870
        %1133 = vmatpush1.msra.mxu0 %v869
        %1134 = vmatprep.subr.mxu0 %v868
        %1135 = vmatpush1.msra.mxu0 %v867
        %1136 = vmatprep.subr.mxu0 %v866
        %1137 = vmatpush1.msra.mxu0 %v865
        %1138 = vmatprep.subr.mxu0 %v864
        %1139 = vmatpush1.msra.mxu0 %v863
        %1140 = vmatprep.subr.mxu0 %v862
        %1141 = vmatpush1.msra.mxu0 %v861
        %1142 = vmatprep.subr.mxu0 %v860
        %1143 = vmatpush1.msra.mxu0 %v859
        %1144 = vmatprep.subr.mxu0 %v858
        %1145 = vmatpush1.msra.mxu0 %v857
        %1146 = vmatprep.subr.mxu0 %v856
        %1147 = vmatpush1.msra.mxu0 %v855
        %1148 = vmatprep.subr.mxu0 %v854
        %1149 = vmatpush1.msra.mxu0 %v853
        %1150 = vmatprep.subr.mxu0 %v852
        %1151 = vmatpush1.msra.mxu0 %v851
        %1152 = vmatprep.subr.mxu0 %v850
        %1153 = vmatpush1.msra.mxu0 %v849
        %1154 = vmatprep.subr.mxu0 %v848
        %1155 = vmatpush1.msra.mxu0 %v847
        %1156 = vmatprep.subr.mxu0 %v846
        %1157 = vmatpush1.msra.mxu0 %v845
        %1158 = vmatprep.subr.mxu0 %v844
        %1159 = vmatpush1.msra.mxu0 %v843
        %1160 = vmatprep.subr.mxu0 %v842
        %1161 = vmatpush1.msra.mxu0 %v841
        %1162 = vmatprep.subr.mxu0 %v904
        %1163 = vmatpush2.msra.mxu0 %v903
        %1164 = vmatprep.subr.mxu0 %v902
        %1165 = vmatpush2.msra.mxu0 %v901
        %1166 = vmatprep.subr.mxu0 %v900
        %1167 = vmatpush2.msra.mxu0 %v899
        %1168 = vmatprep.subr.mxu0 %v898
        %1169 = vmatpush2.msra.mxu0 %v897
        %1170 = vmatprep.subr.mxu0 %v896
        %1171 = vmatpush2.msra.mxu0 %v895
        %1172 = vmatprep.subr.mxu0 %v894
        %1173 = vmatpush2.msra.mxu0 %v893
        %1174 = vmatprep.subr.mxu0 %v892
        %1175 = vmatpush2.msra.mxu0 %v891
        %1176 = vmatprep.subr.mxu0 %v890
        %1177 = vmatpush2.msra.mxu0 %v889
        %1178 = vmatprep.subr.mxu0 %v888
        %1179 = vmatpush2.msra.mxu0 %v887
        %1180 = vmatprep.subr.mxu0 %v886
        %1181 = vmatpush2.msra.mxu0 %v885
        %1182 = vmatprep.subr.mxu0 %v884
        %1183 = vmatpush2.msra.mxu0 %v883
        %1184 = vmatprep.subr.mxu0 %v882
        %1185 = vmatpush2.msra.mxu0 %v881
        %1186 = vmatprep.subr.mxu0 %v880
        %1187 = vmatpush2.msra.mxu0 %v879
        %1188 = vmatprep.subr.mxu0 %v878
        %1189 = vmatpush2.msra.mxu0 %v877
        %1190 = vmatprep.subr.mxu0 %v876
        %1191 = vmatpush2.msra.mxu0 %v875
        %1192 = vmatprep.subr.mxu0 %v874
        %1193 = vmatpush2.msra.mxu0 %v873
        %1194 = vmatprep.mubr.f32.mxu0 %v422
        %1195 = vmatmul.mubr.f32.gmra.mxu0 %v421
        %v1196 = vpop.f32.mrf.mxu0
        %v1197 = vadd.f32 0.0, %v1196
        %v1198 = vpop.f32.mrf.mxu0
        %v1199 = vadd.f32 0.0, %v1198
        %1200 = vdwg.mxu0
        %v1202 = vsel %vm979, %v1129, 0
        %1204 = vmatprep.subr.mxu0 0.0
        %1205 = vmatpush1.msra.mxu0 0.0
        %1206 = vmatprep.subr.mxu0 0.0
        %1207 = vmatpush1.msra.mxu0 0.0
        %1208 = vmatprep.subr.mxu0 0.0
        %1209 = vmatpush1.msra.mxu0 0.0
        %1210 = vmatprep.subr.mxu0 0.0
        %1211 = vmatpush1.msra.mxu0 0.0
        %1212 = vmatprep.subr.mxu0 0.0
        %1213 = vmatpush1.msra.mxu0 0.0
        %1214 = vmatprep.subr.mxu0 0.0
        %1215 = vmatpush1.msra.mxu0 0.0
        %1216 = vmatprep.subr.mxu0 0.0
        %1217 = vmatpush1.msra.mxu0 0.0
        %1218 = vmatprep.subr.mxu0 0.0
        %1219 = vmatpush1.msra.mxu0 0.0
        %1220 = vmatprep.subr.mxu0 0.0
        %1221 = vmatpush1.msra.mxu0 0.0
        %1222 = vmatprep.subr.mxu0 0.0
        %1223 = vmatpush1.msra.mxu0 0.0
        %1224 = vmatprep.subr.mxu0 0.0
        %1225 = vmatpush1.msra.mxu0 0.0
        %1226 = vmatprep.subr.mxu0 0.0
        %1227 = vmatpush1.msra.mxu0 0.0
        %1228 = vmatprep.subr.mxu0 0.0
        %1229 = vmatpush1.msra.mxu0 0.0
        %1230 = vmatprep.subr.mxu0 0.0
        %1231 = vmatpush1.msra.mxu0 0.0
        %1232 = vmatprep.subr.mxu0 0.0
        %1233 = vmatpush1.msra.mxu0 0.0
        %1234 = vmatprep.subr.mxu0 %v1199
        %1235 = vmatpush1.msra.mxu0 %v1197
        %1236 = vmatprep.subr.mxu0 0.0
        %1237 = vmatpush2.msra.mxu0 0.0
        %1238 = vmatprep.subr.mxu0 0.0
        %1239 = vmatpush2.msra.mxu0 0.0
        %1240 = vmatprep.subr.mxu0 0.0
        %1241 = vmatpush2.msra.mxu0 0.0
        %1242 = vmatprep.subr.mxu0 0.0
        %1243 = vmatpush2.msra.mxu0 0.0
        %1244 = vmatprep.subr.mxu0 0.0
        %1245 = vmatpush2.msra.mxu0 0.0
        %1246 = vmatprep.subr.mxu0 0.0
        %1247 = vmatpush2.msra.mxu0 0.0
        %1248 = vmatprep.subr.mxu0 0.0
        %1249 = vmatpush2.msra.mxu0 0.0
        %1250 = vmatprep.subr.mxu0 0.0
        %1251 = vmatpush2.msra.mxu0 0.0
        %1252 = vmatprep.subr.mxu0 0.0
        %1253 = vmatpush2.msra.mxu0 0.0
        %1254 = vmatprep.subr.mxu0 0.0
        %1255 = vmatpush2.msra.mxu0 0.0
        %1256 = vmatprep.subr.mxu0 0.0
        %1257 = vmatpush2.msra.mxu0 0.0
        %1258 = vmatprep.subr.mxu0 0.0
        %1259 = vmatpush2.msra.mxu0 0.0
        %1260 = vmatprep.subr.mxu0 0.0
        %1261 = vmatpush2.msra.mxu0 0.0
        %1262 = vmatprep.subr.mxu0 0.0
        %1263 = vmatpush2.msra.mxu0 0.0
        %1264 = vmatprep.subr.mxu0 0.0
        %1265 = vmatpush2.msra.mxu0 0.0
        %1266 = vmatprep.subr.mxu0 0.0
        %1267 = vmatpush2.msra.mxu0 0.0
        %1268 = vmatprep.mubr.f32.mxu0 0.0
        %1269 = vmatmul.mubr.f32.gmra.mxu0 %v1202
        %v1270 = vpop.f32.mrf.mxu0
        %v1271 = vadd.f32 0.0, %v1270
        %v1272 = vpop.f32.mrf.mxu0
        %v1273 = vadd.f32 0.0, %v1272
        %1274 = vdwg.mxu0
        %v1275 = vadd.f32 %v1124, %v1271
        %v1276 = vadd.f32 %v1126, %v1273
        %v1277 = vld [vmem:[%s4] sm:$0xff]
        %1279 = vset.pattern.permute.xlu0 0
        %1280 = vperm.xlu0 %1279, %v1277
        %v1281 = vpop.permute.xlu0 %1280
        %v1283 = vadd.f32 %v1275, %v1281
        %v1284 = vadd.f32 %v1276, %v1281
        %v1285 = vmax.f32 %v1283, 0.0
        %v1286 = vmax.f32 %v1284, 0.0
        %vm1287 = vcmp.lt.s32.totalorder %v457, 0
        %v1288 = vsub.s32 0, %v457
        %v1289 = vsel %vm1287, %v1288, %v457
        %v1290 = vshrl.u32 %v1289, 4
        %v1291 = vand.u32 %v1289, 15
        %v1292 = vsub.s32 0, %v1291
        %v1293 = vsel %vm1287, %v1292, %v1291
        %vm1294 = vcmp.lt.s32.totalorder %v458, 0
        %v1295 = vsub.s32 0, %v458
        %v1296 = vsel %vm1294, %v1295, %v458
        %v1297 = vshrl.u32 %v1296, 4
        %v1298 = vand.u32 %v1296, 15
        %v1299 = vsub.s32 0, %v1298
        %v1300 = vsel %vm1294, %v1299, %v1298
        %vm1301 = vcmp.ne.s32.totalorder %v1293, 0
        %vm1302 = vcmp.ne.s32.totalorder %v1300, 0
        %vm1303 = vcmp.lt.s32.totalorder %v1293, 0
        %vm1304 = vcmp.lt.s32.totalorder %v1300, 0
        %vm1305 = vmand %vm1303, %vm1301
        %vm1306 = vmand %vm1304, %vm1302
        %v1307 = vadd.s32 %v1293, 16
        %v1308 = vadd.s32 %v1300, 16
        %v1309 = vsel %vm1305, %v1307, %v1293
        %v1310 = vsel %vm1306, %v1308, %v1300
        %v1311 = vadd.s32 %v424, 1
        %v1312 = vadd.s32 %v425, 1
        %v1313 = vadd.s32 %v426, 1
        %v1314 = vadd.s32 %v427, 1
        %v1315 = vadd.s32 %v428, 1
        %v1316 = vadd.s32 %v429, 1
        %v1317 = vadd.s32 %v430, 1
        %v1318 = vadd.s32 %v431, 1
        %v1319 = vadd.s32 %v432, 1
        %v1320 = vadd.s32 %v433, 1
        %v1321 = vadd.s32 %v434, 1
        %v1322 = vadd.s32 %v435, 1
        %v1323 = vadd.s32 %v436, 1
        %v1324 = vadd.s32 %v437, 1
        %v1325 = vadd.s32 %v438, 1
        %v1326 = vadd.s32 %v439, 1
        %v1327 = vadd.s32 %v440, 1
        %v1328 = vadd.s32 %v441, 1
        %v1329 = vadd.s32 %v442, 1
        %v1330 = vadd.s32 %v443, 1
        %v1331 = vadd.s32 %v444, 1
        %v1332 = vadd.s32 %v445, 1
        %v1333 = vadd.s32 %v446, 1
        %v1334 = vadd.s32 %v447, 1
        %v1335 = vadd.s32 %v448, 1
        %v1336 = vadd.s32 %v449, 1
        %v1337 = vadd.s32 %v450, 1
        %v1338 = vadd.s32 %v451, 1
        %v1339 = vadd.s32 %v452, 1
        %v1340 = vadd.s32 %v453, 1
        %v1341 = vadd.s32 %v454, 1
        %v1342 = vadd.s32 %v455, 1
        %vm1343 = vcmp.eq.s32.totalorder %v457, %v1311
        %vm1344 = vcmp.eq.s32.totalorder %v458, %v1311
        %vm1345 = vcmp.eq.s32.totalorder %v457, %v1312
        %vm1346 = vcmp.eq.s32.totalorder %v458, %v1312
        %vm1347 = vcmp.eq.s32.totalorder %v457, %v1313
        %vm1348 = vcmp.eq.s32.totalorder %v458, %v1313
        %vm1349 = vcmp.eq.s32.totalorder %v457, %v1314
        %vm1350 = vcmp.eq.s32.totalorder %v458, %v1314
        %vm1351 = vcmp.eq.s32.totalorder %v457, %v1315
        %vm1352 = vcmp.eq.s32.totalorder %v458, %v1315
        %vm1353 = vcmp.eq.s32.totalorder %v457, %v1316
        %vm1354 = vcmp.eq.s32.totalorder %v458, %v1316
        %vm1355 = vcmp.eq.s32.totalorder %v457, %v1317
        %vm1356 = vcmp.eq.s32.totalorder %v458, %v1317
        %vm1357 = vcmp.eq.s32.totalorder %v457, %v1318
        %vm1358 = vcmp.eq.s32.totalorder %v458, %v1318
        %vm1359 = vcmp.eq.s32.totalorder %v457, %v1319
        %vm1360 = vcmp.eq.s32.totalorder %v458, %v1319
        %vm1361 = vcmp.eq.s32.totalorder %v457, %v1320
        %vm1362 = vcmp.eq.s32.totalorder %v458, %v1320
        %vm1363 = vcmp.eq.s32.totalorder %v457, %v1321
        %vm1364 = vcmp.eq.s32.totalorder %v458, %v1321
        %vm1365 = vcmp.eq.s32.totalorder %v457, %v1322
        %vm1366 = vcmp.eq.s32.totalorder %v458, %v1322
        %vm1367 = vcmp.eq.s32.totalorder %v457, %v1323
        %vm1368 = vcmp.eq.s32.totalorder %v458, %v1323
        %vm1369 = vcmp.eq.s32.totalorder %v457, %v1324
        %vm1370 = vcmp.eq.s32.totalorder %v458, %v1324
        %vm1371 = vcmp.eq.s32.totalorder %v457, %v1325
        %vm1372 = vcmp.eq.s32.totalorder %v458, %v1325
        %vm1373 = vcmp.eq.s32.totalorder %v457, %v1326
        %vm1374 = vcmp.eq.s32.totalorder %v458, %v1326
        %vm1375 = vcmp.eq.s32.totalorder %v457, %v1327
        %vm1376 = vcmp.eq.s32.totalorder %v458, %v1327
        %vm1377 = vcmp.eq.s32.totalorder %v457, %v1328
        %vm1378 = vcmp.eq.s32.totalorder %v458, %v1328
        %vm1379 = vcmp.eq.s32.totalorder %v457, %v1329
        %vm1380 = vcmp.eq.s32.totalorder %v458, %v1329
        %vm1381 = vcmp.eq.s32.totalorder %v457, %v1330
        %vm1382 = vcmp.eq.s32.totalorder %v458, %v1330
        %vm1383 = vcmp.eq.s32.totalorder %v457, %v1331
        %vm1384 = vcmp.eq.s32.totalorder %v458, %v1331
        %vm1385 = vcmp.eq.s32.totalorder %v457, %v1332
        %vm1386 = vcmp.eq.s32.totalorder %v458, %v1332
        %vm1387 = vcmp.eq.s32.totalorder %v457, %v1333
        %vm1388 = vcmp.eq.s32.totalorder %v458, %v1333
        %vm1389 = vcmp.eq.s32.totalorder %v457, %v1334
        %vm1390 = vcmp.eq.s32.totalorder %v458, %v1334
        %vm1391 = vcmp.eq.s32.totalorder %v457, %v1335
        %vm1392 = vcmp.eq.s32.totalorder %v458, %v1335
        %vm1393 = vcmp.eq.s32.totalorder %v457, %v1336
        %vm1394 = vcmp.eq.s32.totalorder %v458, %v1336
        %vm1395 = vcmp.eq.s32.totalorder %v457, %v1337
        %vm1396 = vcmp.eq.s32.totalorder %v458, %v1337
        %vm1397 = vcmp.eq.s32.totalorder %v457, %v1338
        %vm1398 = vcmp.eq.s32.totalorder %v458, %v1338
        %vm1399 = vcmp.eq.s32.totalorder %v457, %v1339
        %vm1400 = vcmp.eq.s32.totalorder %v458, %v1339
        %vm1401 = vcmp.eq.s32.totalorder %v457, %v1340
        %vm1402 = vcmp.eq.s32.totalorder %v458, %v1340
        %vm1403 = vcmp.eq.s32.totalorder %v457, %v1341
        %vm1404 = vcmp.eq.s32.totalorder %v458, %v1341
        %vm1405 = vcmp.eq.s32.totalorder %v457, %v1342
        %vm1406 = vcmp.eq.s32.totalorder %v458, %v1342
        %vm1407 = vcmp.ne.s32.totalorder %v1309, 0
        %vm1408 = vcmp.ne.s32.totalorder %v1310, 0
        %vm1409 = vmand %vm1343, %vm1407
        %vm1410 = vmand %vm1344, %vm1408
        %vm1411 = vmand %vm1345, %vm1407
        %vm1412 = vmand %vm1346, %vm1408
        %vm1413 = vmand %vm1347, %vm1407
        %vm1414 = vmand %vm1348, %vm1408
        %vm1415 = vmand %vm1349, %vm1407
        %vm1416 = vmand %vm1350, %vm1408
        %vm1417 = vmand %vm1351, %vm1407
        %vm1418 = vmand %vm1352, %vm1408
        %vm1419 = vmand %vm1353, %vm1407
        %vm1420 = vmand %vm1354, %vm1408
        %vm1421 = vmand %vm1355, %vm1407
        %vm1422 = vmand %vm1356, %vm1408
        %vm1423 = vmand %vm1357, %vm1407
        %vm1424 = vmand %vm1358, %vm1408
        %vm1425 = vmand %vm1359, %vm1407
        %vm1426 = vmand %vm1360, %vm1408
        %vm1427 = vmand %vm1361, %vm1407
        %vm1428 = vmand %vm1362, %vm1408
        %vm1429 = vmand %vm1363, %vm1407
        %vm1430 = vmand %vm1364, %vm1408
        %vm1431 = vmand %vm1365, %vm1407
        %vm1432 = vmand %vm1366, %vm1408
        %vm1433 = vmand %vm1367, %vm1407
        %vm1434 = vmand %vm1368, %vm1408
        %vm1435 = vmand %vm1369, %vm1407
        %vm1436 = vmand %vm1370, %vm1408
        %vm1437 = vmand %vm1371, %vm1407
        %vm1438 = vmand %vm1372, %vm1408
        %vm1439 = vmand %vm1373, %vm1407
        %vm1440 = vmand %vm1374, %vm1408
        %vm1441 = vmand %vm1375, %vm1407
        %vm1442 = vmand %vm1376, %vm1408
        %vm1443 = vmand %vm1377, %vm1407
        %vm1444 = vmand %vm1378, %vm1408
        %vm1445 = vmand %vm1379, %vm1407
        %vm1446 = vmand %vm1380, %vm1408
        %vm1447 = vmand %vm1381, %vm1407
        %vm1448 = vmand %vm1382, %vm1408
        %vm1449 = vmand %vm1383, %vm1407
        %vm1450 = vmand %vm1384, %vm1408
        %vm1451 = vmand %vm1385, %vm1407
        %vm1452 = vmand %vm1386, %vm1408
        %vm1453 = vmand %vm1387, %vm1407
        %vm1454 = vmand %vm1388, %vm1408
        %vm1455 = vmand %vm1389, %vm1407
        %vm1456 = vmand %vm1390, %vm1408
        %vm1457 = vmand %vm1391, %vm1407
        %vm1458 = vmand %vm1392, %vm1408
        %vm1459 = vmand %vm1393, %vm1407
        %vm1460 = vmand %vm1394, %vm1408
        %vm1461 = vmand %vm1395, %vm1407
        %vm1462 = vmand %vm1396, %vm1408
        %vm1463 = vmand %vm1397, %vm1407
        %vm1464 = vmand %vm1398, %vm1408
        %vm1465 = vmand %vm1399, %vm1407
        %vm1466 = vmand %vm1400, %vm1408
        %vm1467 = vmand %vm1401, %vm1407
        %vm1468 = vmand %vm1402, %vm1408
        %vm1469 = vmand %vm1403, %vm1407
        %vm1470 = vmand %vm1404, %vm1408
        %vm1471 = vmand %vm1405, %vm1407
        %vm1472 = vmand %vm1406, %vm1408
        %v1473 = vsel %vm1409, 1, 0
        %v1474 = vsel %vm1410, 1, 0
        %v1475 = vsel %vm1411, 1, 0
        %v1476 = vsel %vm1412, 1, 0
        %v1477 = vsel %vm1413, 1, 0
        %v1478 = vsel %vm1414, 1, 0
        %v1479 = vsel %vm1415, 1, 0
        %v1480 = vsel %vm1416, 1, 0
        %v1481 = vsel %vm1417, 1, 0
        %v1482 = vsel %vm1418, 1, 0
        %v1483 = vsel %vm1419, 1, 0
        %v1484 = vsel %vm1420, 1, 0
        %v1485 = vsel %vm1421, 1, 0
        %v1486 = vsel %vm1422, 1, 0
        %v1487 = vsel %vm1423, 1, 0
        %v1488 = vsel %vm1424, 1, 0
        %v1489 = vsel %vm1425, 1, 0
        %v1490 = vsel %vm1426, 1, 0
        %v1491 = vsel %vm1427, 1, 0
        %v1492 = vsel %vm1428, 1, 0
        %v1493 = vsel %vm1429, 1, 0
        %v1494 = vsel %vm1430, 1, 0
        %v1495 = vsel %vm1431, 1, 0
        %v1496 = vsel %vm1432, 1, 0
        %v1497 = vsel %vm1433, 1, 0
        %v1498 = vsel %vm1434, 1, 0
        %v1499 = vsel %vm1435, 1, 0
        %v1500 = vsel %vm1436, 1, 0
        %v1501 = vsel %vm1437, 1, 0
        %v1502 = vsel %vm1438, 1, 0
        %v1503 = vsel %vm1439, 1, 0
        %v1504 = vsel %vm1440, 1, 0
        %v1505 = vsel %vm1441, 1, 0
        %v1506 = vsel %vm1442, 1, 0
        %v1507 = vsel %vm1443, 1, 0
        %v1508 = vsel %vm1444, 1, 0
        %v1509 = vsel %vm1445, 1, 0
        %v1510 = vsel %vm1446, 1, 0
        %v1511 = vsel %vm1447, 1, 0
        %v1512 = vsel %vm1448, 1, 0
        %v1513 = vsel %vm1449, 1, 0
        %v1514 = vsel %vm1450, 1, 0
        %v1515 = vsel %vm1451, 1, 0
        %v1516 = vsel %vm1452, 1, 0
        %v1517 = vsel %vm1453, 1, 0
        %v1518 = vsel %vm1454, 1, 0
        %v1519 = vsel %vm1455, 1, 0
        %v1520 = vsel %vm1456, 1, 0
        %v1521 = vsel %vm1457, 1, 0
        %v1522 = vsel %vm1458, 1, 0
        %v1523 = vsel %vm1459, 1, 0
        %v1524 = vsel %vm1460, 1, 0
        %v1525 = vsel %vm1461, 1, 0
        %v1526 = vsel %vm1462, 1, 0
        %v1527 = vsel %vm1463, 1, 0
        %v1528 = vsel %vm1464, 1, 0
        %v1529 = vsel %vm1465, 1, 0
        %v1530 = vsel %vm1466, 1, 0
        %v1531 = vsel %vm1467, 1, 0
        %v1532 = vsel %vm1468, 1, 0
        %v1533 = vsel %vm1469, 1, 0
        %v1534 = vsel %vm1470, 1, 0
        %v1535 = vsel %vm1471, 1, 0
        %v1536 = vsel %vm1472, 1, 0
        %v1537 = vcvt.s32.f32 %v1473
        %v1538 = vcvt.s32.f32 %v1474
        %v1539 = vcvt.s32.f32 %v1475
        %v1540 = vcvt.s32.f32 %v1476
        %v1541 = vcvt.s32.f32 %v1477
        %v1542 = vcvt.s32.f32 %v1478
        %v1543 = vcvt.s32.f32 %v1479
        %v1544 = vcvt.s32.f32 %v1480
        %v1545 = vcvt.s32.f32 %v1481
        %v1546 = vcvt.s32.f32 %v1482
        %v1547 = vcvt.s32.f32 %v1483
        %v1548 = vcvt.s32.f32 %v1484
        %v1549 = vcvt.s32.f32 %v1485
        %v1550 = vcvt.s32.f32 %v1486
        %v1551 = vcvt.s32.f32 %v1487
        %v1552 = vcvt.s32.f32 %v1488
        %v1553 = vcvt.s32.f32 %v1489
        %v1554 = vcvt.s32.f32 %v1490
        %v1555 = vcvt.s32.f32 %v1491
        %v1556 = vcvt.s32.f32 %v1492
        %v1557 = vcvt.s32.f32 %v1493
        %v1558 = vcvt.s32.f32 %v1494
        %v1559 = vcvt.s32.f32 %v1495
        %v1560 = vcvt.s32.f32 %v1496
        %v1561 = vcvt.s32.f32 %v1497
        %v1562 = vcvt.s32.f32 %v1498
        %v1563 = vcvt.s32.f32 %v1499
        %v1564 = vcvt.s32.f32 %v1500
        %v1565 = vcvt.s32.f32 %v1501
        %v1566 = vcvt.s32.f32 %v1502
        %v1567 = vcvt.s32.f32 %v1503
        %v1568 = vcvt.s32.f32 %v1504
        %v1569 = vcvt.s32.f32 %v1505
        %v1570 = vcvt.s32.f32 %v1506
        %v1571 = vcvt.s32.f32 %v1507
        %v1572 = vcvt.s32.f32 %v1508
        %v1573 = vcvt.s32.f32 %v1509
        %v1574 = vcvt.s32.f32 %v1510
        %v1575 = vcvt.s32.f32 %v1511
        %v1576 = vcvt.s32.f32 %v1512
        %v1577 = vcvt.s32.f32 %v1513
        %v1578 = vcvt.s32.f32 %v1514
        %v1579 = vcvt.s32.f32 %v1515
        %v1580 = vcvt.s32.f32 %v1516
        %v1581 = vcvt.s32.f32 %v1517
        %v1582 = vcvt.s32.f32 %v1518
        %v1583 = vcvt.s32.f32 %v1519
        %v1584 = vcvt.s32.f32 %v1520
        %v1585 = vcvt.s32.f32 %v1521
        %v1586 = vcvt.s32.f32 %v1522
        %v1587 = vcvt.s32.f32 %v1523
        %v1588 = vcvt.s32.f32 %v1524
        %v1589 = vcvt.s32.f32 %v1525
        %v1590 = vcvt.s32.f32 %v1526
        %v1591 = vcvt.s32.f32 %v1527
        %v1592 = vcvt.s32.f32 %v1528
        %v1593 = vcvt.s32.f32 %v1529
        %v1594 = vcvt.s32.f32 %v1530
        %v1595 = vcvt.s32.f32 %v1531
        %v1596 = vcvt.s32.f32 %v1532
        %v1597 = vcvt.s32.f32 %v1533
        %v1598 = vcvt.s32.f32 %v1534
        %v1599 = vcvt.s32.f32 %v1535
        %v1600 = vcvt.s32.f32 %v1536
        %v1601 = vsub.s32 %v424, 1
        %v1602 = vsub.s32 %v425, 1
        %v1603 = vsub.s32 %v426, 1
        %v1604 = vsub.s32 %v427, 1
        %v1605 = vsub.s32 %v428, 1
        %v1606 = vsub.s32 %v429, 1
        %v1607 = vsub.s32 %v430, 1
        %v1608 = vsub.s32 %v431, 1
        %v1609 = vsub.s32 %v432, 1
        %v1610 = vsub.s32 %v433, 1
        %v1611 = vsub.s32 %v434, 1
        %v1612 = vsub.s32 %v435, 1
        %v1613 = vsub.s32 %v436, 1
        %v1614 = vsub.s32 %v437, 1
        %v1615 = vsub.s32 %v438, 1
        %v1616 = vsub.s32 %v439, 1
        %v1617 = vsub.s32 %v440, 1
        %v1618 = vsub.s32 %v441, 1
        %v1619 = vsub.s32 %v442, 1
        %v1620 = vsub.s32 %v443, 1
        %v1621 = vsub.s32 %v444, 1
        %v1622 = vsub.s32 %v445, 1
        %v1623 = vsub.s32 %v446, 1
        %v1624 = vsub.s32 %v447, 1
        %v1625 = vsub.s32 %v448, 1
        %v1626 = vsub.s32 %v449, 1
        %v1627 = vsub.s32 %v450, 1
        %v1628 = vsub.s32 %v451, 1
        %v1629 = vsub.s32 %v452, 1
        %v1630 = vsub.s32 %v453, 1
        %v1631 = vsub.s32 %v454, 1
        %v1632 = vsub.s32 %v455, 1
        %vm1633 = vcmp.eq.s32.totalorder %v457, %v1601
        %vm1634 = vcmp.eq.s32.totalorder %v458, %v1601
        %vm1635 = vcmp.eq.s32.totalorder %v457, %v1602
        %vm1636 = vcmp.eq.s32.totalorder %v458, %v1602
        %vm1637 = vcmp.eq.s32.totalorder %v457, %v1603
        %vm1638 = vcmp.eq.s32.totalorder %v458, %v1603
        %vm1639 = vcmp.eq.s32.totalorder %v457, %v1604
        %vm1640 = vcmp.eq.s32.totalorder %v458, %v1604
        %vm1641 = vcmp.eq.s32.totalorder %v457, %v1605
        %vm1642 = vcmp.eq.s32.totalorder %v458, %v1605
        %vm1643 = vcmp.eq.s32.totalorder %v457, %v1606
        %vm1644 = vcmp.eq.s32.totalorder %v458, %v1606
        %vm1645 = vcmp.eq.s32.totalorder %v457, %v1607
        %vm1646 = vcmp.eq.s32.totalorder %v458, %v1607
        %vm1647 = vcmp.eq.s32.totalorder %v457, %v1608
        %vm1648 = vcmp.eq.s32.totalorder %v458, %v1608
        %vm1649 = vcmp.eq.s32.totalorder %v457, %v1609
        %vm1650 = vcmp.eq.s32.totalorder %v458, %v1609
        %vm1651 = vcmp.eq.s32.totalorder %v457, %v1610
        %vm1652 = vcmp.eq.s32.totalorder %v458, %v1610
        %vm1653 = vcmp.eq.s32.totalorder %v457, %v1611
        %vm1654 = vcmp.eq.s32.totalorder %v458, %v1611
        %vm1655 = vcmp.eq.s32.totalorder %v457, %v1612
        %vm1656 = vcmp.eq.s32.totalorder %v458, %v1612
        %vm1657 = vcmp.eq.s32.totalorder %v457, %v1613
        %vm1658 = vcmp.eq.s32.totalorder %v458, %v1613
        %vm1659 = vcmp.eq.s32.totalorder %v457, %v1614
        %vm1660 = vcmp.eq.s32.totalorder %v458, %v1614
        %vm1661 = vcmp.eq.s32.totalorder %v457, %v1615
        %vm1662 = vcmp.eq.s32.totalorder %v458, %v1615
        %vm1663 = vcmp.eq.s32.totalorder %v457, %v1616
        %vm1664 = vcmp.eq.s32.totalorder %v458, %v1616
        %vm1665 = vcmp.eq.s32.totalorder %v457, %v1617
        %vm1666 = vcmp.eq.s32.totalorder %v458, %v1617
        %vm1667 = vcmp.eq.s32.totalorder %v457, %v1618
        %vm1668 = vcmp.eq.s32.totalorder %v458, %v1618
        %vm1669 = vcmp.eq.s32.totalorder %v457, %v1619
        %vm1670 = vcmp.eq.s32.totalorder %v458, %v1619
        %vm1671 = vcmp.eq.s32.totalorder %v457, %v1620
        %vm1672 = vcmp.eq.s32.totalorder %v458, %v1620
        %vm1673 = vcmp.eq.s32.totalorder %v457, %v1621
        %vm1674 = vcmp.eq.s32.totalorder %v458, %v1621
        %vm1675 = vcmp.eq.s32.totalorder %v457, %v1622
        %vm1676 = vcmp.eq.s32.totalorder %v458, %v1622
        %vm1677 = vcmp.eq.s32.totalorder %v457, %v1623
        %vm1678 = vcmp.eq.s32.totalorder %v458, %v1623
        %vm1679 = vcmp.eq.s32.totalorder %v457, %v1624
        %vm1680 = vcmp.eq.s32.totalorder %v458, %v1624
        %vm1681 = vcmp.eq.s32.totalorder %v457, %v1625
        %vm1682 = vcmp.eq.s32.totalorder %v458, %v1625
        %vm1683 = vcmp.eq.s32.totalorder %v457, %v1626
        %vm1684 = vcmp.eq.s32.totalorder %v458, %v1626
        %vm1685 = vcmp.eq.s32.totalorder %v457, %v1627
        %vm1686 = vcmp.eq.s32.totalorder %v458, %v1627
        %vm1687 = vcmp.eq.s32.totalorder %v457, %v1628
        %vm1688 = vcmp.eq.s32.totalorder %v458, %v1628
        %vm1689 = vcmp.eq.s32.totalorder %v457, %v1629
        %vm1690 = vcmp.eq.s32.totalorder %v458, %v1629
        %vm1691 = vcmp.eq.s32.totalorder %v457, %v1630
        %vm1692 = vcmp.eq.s32.totalorder %v458, %v1630
        %vm1693 = vcmp.eq.s32.totalorder %v457, %v1631
        %vm1694 = vcmp.eq.s32.totalorder %v458, %v1631
        %vm1695 = vcmp.eq.s32.totalorder %v457, %v1632
        %vm1696 = vcmp.eq.s32.totalorder %v458, %v1632
        %vm1697 = vcmp.ne.s32.totalorder %v1309, 15
        %vm1698 = vcmp.ne.s32.totalorder %v1310, 15
        %vm1699 = vmand %vm1633, %vm1697
        %vm1700 = vmand %vm1634, %vm1698
        %vm1701 = vmand %vm1635, %vm1697
        %vm1702 = vmand %vm1636, %vm1698
        %vm1703 = vmand %vm1637, %vm1697
        %vm1704 = vmand %vm1638, %vm1698
        %vm1705 = vmand %vm1639, %vm1697
        %vm1706 = vmand %vm1640, %vm1698
        %vm1707 = vmand %vm1641, %vm1697
        %vm1708 = vmand %vm1642, %vm1698
        %vm1709 = vmand %vm1643, %vm1697
        %vm1710 = vmand %vm1644, %vm1698
        %vm1711 = vmand %vm1645, %vm1697
        %vm1712 = vmand %vm1646, %vm1698
        %vm1713 = vmand %vm1647, %vm1697
        %vm1714 = vmand %vm1648, %vm1698
        %vm1715 = vmand %vm1649, %vm1697
        %vm1716 = vmand %vm1650, %vm1698
        %vm1717 = vmand %vm1651, %vm1697
        %vm1718 = vmand %vm1652, %vm1698
        %vm1719 = vmand %vm1653, %vm1697
        %vm1720 = vmand %vm1654, %vm1698
        %vm1721 = vmand %vm1655, %vm1697
        %vm1722 = vmand %vm1656, %vm1698
        %vm1723 = vmand %vm1657, %vm1697
        %vm1724 = vmand %vm1658, %vm1698
        %vm1725 = vmand %vm1659, %vm1697
        %vm1726 = vmand %vm1660, %vm1698
        %vm1727 = vmand %vm1661, %vm1697
        %vm1728 = vmand %vm1662, %vm1698
        %vm1729 = vmand %vm1663, %vm1697
        %vm1730 = vmand %vm1664, %vm1698
        %vm1731 = vmand %vm1665, %vm1697
        %vm1732 = vmand %vm1666, %vm1698
        %vm1733 = vmand %vm1667, %vm1697
        %vm1734 = vmand %vm1668, %vm1698
        %vm1735 = vmand %vm1669, %vm1697
        %vm1736 = vmand %vm1670, %vm1698
        %vm1737 = vmand %vm1671, %vm1697
        %vm1738 = vmand %vm1672, %vm1698
        %vm1739 = vmand %vm1673, %vm1697
        %vm1740 = vmand %vm1674, %vm1698
        %vm1741 = vmand %vm1675, %vm1697
        %vm1742 = vmand %vm1676, %vm1698
        %vm1743 = vmand %vm1677, %vm1697
        %vm1744 = vmand %vm1678, %vm1698
        %vm1745 = vmand %vm1679, %vm1697
        %vm1746 = vmand %vm1680, %vm1698
        %vm1747 = vmand %vm1681, %vm1697
        %vm1748 = vmand %vm1682, %vm1698
        %vm1749 = vmand %vm1683, %vm1697
        %vm1750 = vmand %vm1684, %vm1698
        %vm1751 = vmand %vm1685, %vm1697
        %vm1752 = vmand %vm1686, %vm1698
        %vm1753 = vmand %vm1687, %vm1697
        %vm1754 = vmand %vm1688, %vm1698
        %vm1755 = vmand %vm1689, %vm1697
        %vm1756 = vmand %vm1690, %vm1698
        %vm1757 = vmand %vm1691, %vm1697
        %vm1758 = vmand %vm1692, %vm1698
        %vm1759 = vmand %vm1693, %vm1697
        %vm1760 = vmand %vm1694, %vm1698
        %vm1761 = vmand %vm1695, %vm1697
        %vm1762 = vmand %vm1696, %vm1698
        %v1763 = vsel %vm1699, 1, 0
        %v1764 = vsel %vm1700, 1, 0
        %v1765 = vsel %vm1701, 1, 0
        %v1766 = vsel %vm1702, 1, 0
        %v1767 = vsel %vm1703, 1, 0
        %v1768 = vsel %vm1704, 1, 0
        %v1769 = vsel %vm1705, 1, 0
        %v1770 = vsel %vm1706, 1, 0
        %v1771 = vsel %vm1707, 1, 0
        %v1772 = vsel %vm1708, 1, 0
        %v1773 = vsel %vm1709, 1, 0
        %v1774 = vsel %vm1710, 1, 0
        %v1775 = vsel %vm1711, 1, 0
        %v1776 = vsel %vm1712, 1, 0
        %v1777 = vsel %vm1713, 1, 0
        %v1778 = vsel %vm1714, 1, 0
        %v1779 = vsel %vm1715, 1, 0
        %v1780 = vsel %vm1716, 1, 0
        %v1781 = vsel %vm1717, 1, 0
        %v1782 = vsel %vm1718, 1, 0
        %v1783 = vsel %vm1719, 1, 0
        %v1784 = vsel %vm1720, 1, 0
        %v1785 = vsel %vm1721, 1, 0
        %v1786 = vsel %vm1722, 1, 0
        %v1787 = vsel %vm1723, 1, 0
        %v1788 = vsel %vm1724, 1, 0
        %v1789 = vsel %vm1725, 1, 0
        %v1790 = vsel %vm1726, 1, 0
        %v1791 = vsel %vm1727, 1, 0
        %v1792 = vsel %vm1728, 1, 0
        %v1793 = vsel %vm1729, 1, 0
        %v1794 = vsel %vm1730, 1, 0
        %v1795 = vsel %vm1731, 1, 0
        %v1796 = vsel %vm1732, 1, 0
        %v1797 = vsel %vm1733, 1, 0
        %v1798 = vsel %vm1734, 1, 0
        %v1799 = vsel %vm1735, 1, 0
        %v1800 = vsel %vm1736, 1, 0
        %v1801 = vsel %vm1737, 1, 0
        %v1802 = vsel %vm1738, 1, 0
        %v1803 = vsel %vm1739, 1, 0
        %v1804 = vsel %vm1740, 1, 0
        %v1805 = vsel %vm1741, 1, 0
        %v1806 = vsel %vm1742, 1, 0
        %v1807 = vsel %vm1743, 1, 0
        %v1808 = vsel %vm1744, 1, 0
        %v1809 = vsel %vm1745, 1, 0
        %v1810 = vsel %vm1746, 1, 0
        %v1811 = vsel %vm1747, 1, 0
        %v1812 = vsel %vm1748, 1, 0
        %v1813 = vsel %vm1749, 1, 0
        %v1814 = vsel %vm1750, 1, 0
        %v1815 = vsel %vm1751, 1, 0
        %v1816 = vsel %vm1752, 1, 0
        %v1817 = vsel %vm1753, 1, 0
        %v1818 = vsel %vm1754, 1, 0
        %v1819 = vsel %vm1755, 1, 0
        %v1820 = vsel %vm1756, 1, 0
        %v1821 = vsel %vm1757, 1, 0
        %v1822 = vsel %vm1758, 1, 0
        %v1823 = vsel %vm1759, 1, 0
        %v1824 = vsel %vm1760, 1, 0
        %v1825 = vsel %vm1761, 1, 0
        %v1826 = vsel %vm1762, 1, 0
        %v1827 = vcvt.s32.f32 %v1763
        %v1828 = vcvt.s32.f32 %v1764
        %v1829 = vcvt.s32.f32 %v1765
        %v1830 = vcvt.s32.f32 %v1766
        %v1831 = vcvt.s32.f32 %v1767
        %v1832 = vcvt.s32.f32 %v1768
        %v1833 = vcvt.s32.f32 %v1769
        %v1834 = vcvt.s32.f32 %v1770
        %v1835 = vcvt.s32.f32 %v1771
        %v1836 = vcvt.s32.f32 %v1772
        %v1837 = vcvt.s32.f32 %v1773
        %v1838 = vcvt.s32.f32 %v1774
        %v1839 = vcvt.s32.f32 %v1775
        %v1840 = vcvt.s32.f32 %v1776
        %v1841 = vcvt.s32.f32 %v1777
        %v1842 = vcvt.s32.f32 %v1778
        %v1843 = vcvt.s32.f32 %v1779
        %v1844 = vcvt.s32.f32 %v1780
        %v1845 = vcvt.s32.f32 %v1781
        %v1846 = vcvt.s32.f32 %v1782
        %v1847 = vcvt.s32.f32 %v1783
        %v1848 = vcvt.s32.f32 %v1784
        %v1849 = vcvt.s32.f32 %v1785
        %v1850 = vcvt.s32.f32 %v1786
        %v1851 = vcvt.s32.f32 %v1787
        %v1852 = vcvt.s32.f32 %v1788
        %v1853 = vcvt.s32.f32 %v1789
        %v1854 = vcvt.s32.f32 %v1790
        %v1855 = vcvt.s32.f32 %v1791
        %v1856 = vcvt.s32.f32 %v1792
        %v1857 = vcvt.s32.f32 %v1793
        %v1858 = vcvt.s32.f32 %v1794
        %v1859 = vcvt.s32.f32 %v1795
        %v1860 = vcvt.s32.f32 %v1796
        %v1861 = vcvt.s32.f32 %v1797
        %v1862 = vcvt.s32.f32 %v1798
        %v1863 = vcvt.s32.f32 %v1799
        %v1864 = vcvt.s32.f32 %v1800
        %v1865 = vcvt.s32.f32 %v1801
        %v1866 = vcvt.s32.f32 %v1802
        %v1867 = vcvt.s32.f32 %v1803
        %v1868 = vcvt.s32.f32 %v1804
        %v1869 = vcvt.s32.f32 %v1805
        %v1870 = vcvt.s32.f32 %v1806
        %v1871 = vcvt.s32.f32 %v1807
        %v1872 = vcvt.s32.f32 %v1808
        %v1873 = vcvt.s32.f32 %v1809
        %v1874 = vcvt.s32.f32 %v1810
        %v1875 = vcvt.s32.f32 %v1811
        %v1876 = vcvt.s32.f32 %v1812
        %v1877 = vcvt.s32.f32 %v1813
        %v1878 = vcvt.s32.f32 %v1814
        %v1879 = vcvt.s32.f32 %v1815
        %v1880 = vcvt.s32.f32 %v1816
        %v1881 = vcvt.s32.f32 %v1817
        %v1882 = vcvt.s32.f32 %v1818
        %v1883 = vcvt.s32.f32 %v1819
        %v1884 = vcvt.s32.f32 %v1820
        %v1885 = vcvt.s32.f32 %v1821
        %v1886 = vcvt.s32.f32 %v1822
        %v1887 = vcvt.s32.f32 %v1823
        %v1888 = vcvt.s32.f32 %v1824
        %v1889 = vcvt.s32.f32 %v1825
        %v1890 = vcvt.s32.f32 %v1826
        %v1891 = vld [vmem:[%s5] sm:$0xff]
        %1892 = vmatprep.subr.mxu0 %v1568
        %1893 = vmatpush1.msra.mxu0 %v1567
        %1894 = vmatprep.subr.mxu0 %v1566
        %1895 = vmatpush1.msra.mxu0 %v1565
        %1896 = vmatprep.subr.mxu0 %v1564
        %1897 = vmatpush1.msra.mxu0 %v1563
        %1898 = vmatprep.subr.mxu0 %v1562
        %1899 = vmatpush1.msra.mxu0 %v1561
        %1900 = vmatprep.subr.mxu0 %v1560
        %1901 = vmatpush1.msra.mxu0 %v1559
        %1902 = vmatprep.subr.mxu0 %v1558
        %1903 = vmatpush1.msra.mxu0 %v1557
        %1904 = vmatprep.subr.mxu0 %v1556
        %1905 = vmatpush1.msra.mxu0 %v1555
        %1906 = vmatprep.subr.mxu0 %v1554
        %1907 = vmatpush1.msra.mxu0 %v1553
        %1908 = vmatprep.subr.mxu0 %v1552
        %1909 = vmatpush1.msra.mxu0 %v1551
        %1910 = vmatprep.subr.mxu0 %v1550
        %1911 = vmatpush1.msra.mxu0 %v1549
        %1912 = vmatprep.subr.mxu0 %v1548
        %1913 = vmatpush1.msra.mxu0 %v1547
        %1914 = vmatprep.subr.mxu0 %v1546
        %1915 = vmatpush1.msra.mxu0 %v1545
        %1916 = vmatprep.subr.mxu0 %v1544
        %1917 = vmatpush1.msra.mxu0 %v1543
        %1918 = vmatprep.subr.mxu0 %v1542
        %1919 = vmatpush1.msra.mxu0 %v1541
        %1920 = vmatprep.subr.mxu0 %v1540
        %1921 = vmatpush1.msra.mxu0 %v1539
        %1922 = vmatprep.subr.mxu0 %v1538
        %1923 = vmatpush1.msra.mxu0 %v1537
        %1924 = vmatprep.subr.mxu0 %v1600
        %1925 = vmatpush2.msra.mxu0 %v1599
        %1926 = vmatprep.subr.mxu0 %v1598
        %1927 = vmatpush2.msra.mxu0 %v1597
        %1928 = vmatprep.subr.mxu0 %v1596
        %1929 = vmatpush2.msra.mxu0 %v1595
        %1930 = vmatprep.subr.mxu0 %v1594
        %1931 = vmatpush2.msra.mxu0 %v1593
        %1932 = vmatprep.subr.mxu0 %v1592
        %1933 = vmatpush2.msra.mxu0 %v1591
        %1934 = vmatprep.subr.mxu0 %v1590
        %1935 = vmatpush2.msra.mxu0 %v1589
        %1936 = vmatprep.subr.mxu0 %v1588
        %1937 = vmatpush2.msra.mxu0 %v1587
        %1938 = vmatprep.subr.mxu0 %v1586
        %1939 = vmatpush2.msra.mxu0 %v1585
        %1940 = vmatprep.subr.mxu0 %v1584
        %1941 = vmatpush2.msra.mxu0 %v1583
        %1942 = vmatprep.subr.mxu0 %v1582
        %1943 = vmatpush2.msra.mxu0 %v1581
        %1944 = vmatprep.subr.mxu0 %v1580
        %1945 = vmatpush2.msra.mxu0 %v1579
        %1946 = vmatprep.subr.mxu0 %v1578
        %1947 = vmatpush2.msra.mxu0 %v1577
        %1948 = vmatprep.subr.mxu0 %v1576
        %1949 = vmatpush2.msra.mxu0 %v1575
        %1950 = vmatprep.subr.mxu0 %v1574
        %1951 = vmatpush2.msra.mxu0 %v1573
        %1952 = vmatprep.subr.mxu0 %v1572
        %1953 = vmatpush2.msra.mxu0 %v1571
        %1954 = vmatprep.subr.mxu0 %v1570
        %1955 = vmatpush2.msra.mxu0 %v1569
        %1956 = vmatprep.mubr.f32.mxu0 %v1286
        %1957 = vmatmul.mubr.f32.gmra.mxu0 %v1285
        %v1958 = vpop.f32.mrf.mxu0
        %v1959 = vadd.f32 0.0, %v1958
        %v1960 = vpop.f32.mrf.mxu0
        %v1961 = vadd.f32 0.0, %v1960
        %1962 = vdwg.mxu0
        %s1963 = scalar_lea.vmem %s5, 8
        %v1964 = vld [vmem:[%s1963] sm:$0xff]
        %v1966 = vsel %vm979, %v1964, 0
        %1968 = vmatprep.subr.mxu0 0.0
        %1969 = vmatpush1.msra.mxu0 0.0
        %1970 = vmatprep.subr.mxu0 0.0
        %1971 = vmatpush1.msra.mxu0 0.0
        %1972 = vmatprep.subr.mxu0 0.0
        %1973 = vmatpush1.msra.mxu0 0.0
        %1974 = vmatprep.subr.mxu0 0.0
        %1975 = vmatpush1.msra.mxu0 0.0
        %1976 = vmatprep.subr.mxu0 0.0
        %1977 = vmatpush1.msra.mxu0 0.0
        %1978 = vmatprep.subr.mxu0 0.0
        %1979 = vmatpush1.msra.mxu0 0.0
        %1980 = vmatprep.subr.mxu0 0.0
        %1981 = vmatpush1.msra.mxu0 0.0
        %1982 = vmatprep.subr.mxu0 0.0
        %1983 = vmatpush1.msra.mxu0 0.0
        %1984 = vmatprep.subr.mxu0 0.0
        %1985 = vmatpush1.msra.mxu0 0.0
        %1986 = vmatprep.subr.mxu0 0.0
        %1987 = vmatpush1.msra.mxu0 0.0
        %1988 = vmatprep.subr.mxu0 0.0
        %1989 = vmatpush1.msra.mxu0 0.0
        %1990 = vmatprep.subr.mxu0 0.0
        %1991 = vmatpush1.msra.mxu0 0.0
        %1992 = vmatprep.subr.mxu0 0.0
        %1993 = vmatpush1.msra.mxu0 0.0
        %1994 = vmatprep.subr.mxu0 0.0
        %1995 = vmatpush1.msra.mxu0 0.0
        %1996 = vmatprep.subr.mxu0 0.0
        %1997 = vmatpush1.msra.mxu0 0.0
        %1998 = vmatprep.subr.mxu0 %v1286
        %1999 = vmatpush1.msra.mxu0 %v1285
        %2000 = vmatprep.subr.mxu0 0.0
        %2001 = vmatpush2.msra.mxu0 0.0
        %2002 = vmatprep.subr.mxu0 0.0
        %2003 = vmatpush2.msra.mxu0 0.0
        %2004 = vmatprep.subr.mxu0 0.0
        %2005 = vmatpush2.msra.mxu0 0.0
        %2006 = vmatprep.subr.mxu0 0.0
        %2007 = vmatpush2.msra.mxu0 0.0
        %2008 = vmatprep.subr.mxu0 0.0
        %2009 = vmatpush2.msra.mxu0 0.0
        %2010 = vmatprep.subr.mxu0 0.0
        %2011 = vmatpush2.msra.mxu0 0.0
        %2012 = vmatprep.subr.mxu0 0.0
        %2013 = vmatpush2.msra.mxu0 0.0
        %2014 = vmatprep.subr.mxu0 0.0
        %2015 = vmatpush2.msra.mxu0 0.0
        %2016 = vmatprep.subr.mxu0 0.0
        %2017 = vmatpush2.msra.mxu0 0.0
        %2018 = vmatprep.subr.mxu0 0.0
        %2019 = vmatpush2.msra.mxu0 0.0
        %2020 = vmatprep.subr.mxu0 0.0
        %2021 = vmatpush2.msra.mxu0 0.0
        %2022 = vmatprep.subr.mxu0 0.0
        %2023 = vmatpush2.msra.mxu0 0.0
        %2024 = vmatprep.subr.mxu0 0.0
        %2025 = vmatpush2.msra.mxu0 0.0
        %2026 = vmatprep.subr.mxu0 0.0
        %2027 = vmatpush2.msra.mxu0 0.0
        %2028 = vmatprep.subr.mxu0 0.0
        %2029 = vmatpush2.msra.mxu0 0.0
        %2030 = vmatprep.subr.mxu0 0.0
        %2031 = vmatpush2.msra.mxu0 0.0
        %2032 = vmatprep.mubr.f32.mxu0 0.0
        %2033 = vmatmul.mubr.f32.gmra.mxu0 %v1966
        %v2034 = vpop.f32.mrf.mxu0
        %v2035 = vadd.f32 0.0, %v2034
        %v2036 = vpop.f32.mrf.mxu0
        %v2037 = vadd.f32 0.0, %v2036
        %2038 = vdwg.mxu0
        %v2040 = vsel %vm979, %v1891, 0
        %2042 = vmatprep.subr.mxu0 0.0
        %2043 = vmatpush1.msra.mxu0 0.0
        %2044 = vmatprep.subr.mxu0 0.0
        %2045 = vmatpush1.msra.mxu0 0.0
        %2046 = vmatprep.subr.mxu0 0.0
        %2047 = vmatpush1.msra.mxu0 0.0
        %2048 = vmatprep.subr.mxu0 0.0
        %2049 = vmatpush1.msra.mxu0 0.0
        %2050 = vmatprep.subr.mxu0 0.0
        %2051 = vmatpush1.msra.mxu0 0.0
        %2052 = vmatprep.subr.mxu0 0.0
        %2053 = vmatpush1.msra.mxu0 0.0
        %2054 = vmatprep.subr.mxu0 0.0
        %2055 = vmatpush1.msra.mxu0 0.0
        %2056 = vmatprep.subr.mxu0 0.0
        %2057 = vmatpush1.msra.mxu0 0.0
        %2058 = vmatprep.subr.mxu0 0.0
        %2059 = vmatpush1.msra.mxu0 0.0
        %2060 = vmatprep.subr.mxu0 0.0
        %2061 = vmatpush1.msra.mxu0 0.0
        %2062 = vmatprep.subr.mxu0 0.0
        %2063 = vmatpush1.msra.mxu0 0.0
        %2064 = vmatprep.subr.mxu0 0.0
        %2065 = vmatpush1.msra.mxu0 0.0
        %2066 = vmatprep.subr.mxu0 0.0
        %2067 = vmatpush1.msra.mxu0 0.0
        %2068 = vmatprep.subr.mxu0 0.0
        %2069 = vmatpush1.msra.mxu0 0.0
        %2070 = vmatprep.subr.mxu0 0.0
        %2071 = vmatpush1.msra.mxu0 0.0
        %2072 = vmatprep.subr.mxu0 %v1961
        %2073 = vmatpush1.msra.mxu0 %v1959
        %2074 = vmatprep.subr.mxu0 0.0
        %2075 = vmatpush2.msra.mxu0 0.0
        %2076 = vmatprep.subr.mxu0 0.0
        %2077 = vmatpush2.msra.mxu0 0.0
        %2078 = vmatprep.subr.mxu0 0.0
        %2079 = vmatpush2.msra.mxu0 0.0
        %2080 = vmatprep.subr.mxu0 0.0
        %2081 = vmatpush2.msra.mxu0 0.0
        %2082 = vmatprep.subr.mxu0 0.0
        %2083 = vmatpush2.msra.mxu0 0.0
        %2084 = vmatprep.subr.mxu0 0.0
        %2085 = vmatpush2.msra.mxu0 0.0
        %2086 = vmatprep.subr.mxu0 0.0
        %2087 = vmatpush2.msra.mxu0 0.0
        %2088 = vmatprep.subr.mxu0 0.0
        %2089 = vmatpush2.msra.mxu0 0.0
        %2090 = vmatprep.subr.mxu0 0.0
        %2091 = vmatpush2.msra.mxu0 0.0
        %2092 = vmatprep.subr.mxu0 0.0
        %2093 = vmatpush2.msra.mxu0 0.0
        %2094 = vmatprep.subr.mxu0 0.0
        %2095 = vmatpush2.msra.mxu0 0.0
        %2096 = vmatprep.subr.mxu0 0.0
        %2097 = vmatpush2.msra.mxu0 0.0
        %2098 = vmatprep.subr.mxu0 0.0
        %2099 = vmatpush2.msra.mxu0 0.0
        %2100 = vmatprep.subr.mxu0 0.0
        %2101 = vmatpush2.msra.mxu0 0.0
        %2102 = vmatprep.subr.mxu0 0.0
        %2103 = vmatpush2.msra.mxu0 0.0
        %2104 = vmatprep.subr.mxu0 0.0
        %2105 = vmatpush2.msra.mxu0 0.0
        %2106 = vmatprep.mubr.f32.mxu0 0.0
        %2107 = vmatmul.mubr.f32.gmra.mxu0 %v2040
        %v2108 = vpop.f32.mrf.mxu0
        %v2109 = vadd.f32 %v2035, %v2108
        %v2110 = vpop.f32.mrf.mxu0
        %v2111 = vadd.f32 %v2037, %v2110
        %2112 = vdwg.mxu0
        %s2113 = scalar_lea.vmem %s5, 16
        %v2114 = vld [vmem:[%s2113] sm:$0xff]
        %2115 = vmatprep.subr.mxu0 %v1858
        %2116 = vmatpush1.msra.mxu0 %v1857
        %2117 = vmatprep.subr.mxu0 %v1856
        %2118 = vmatpush1.msra.mxu0 %v1855
        %2119 = vmatprep.subr.mxu0 %v1854
        %2120 = vmatpush1.msra.mxu0 %v1853
        %2121 = vmatprep.subr.mxu0 %v1852
        %2122 = vmatpush1.msra.mxu0 %v1851
        %2123 = vmatprep.subr.mxu0 %v1850
        %2124 = vmatpush1.msra.mxu0 %v1849
        %2125 = vmatprep.subr.mxu0 %v1848
        %2126 = vmatpush1.msra.mxu0 %v1847
        %2127 = vmatprep.subr.mxu0 %v1846
        %2128 = vmatpush1.msra.mxu0 %v1845
        %2129 = vmatprep.subr.mxu0 %v1844
        %2130 = vmatpush1.msra.mxu0 %v1843
        %2131 = vmatprep.subr.mxu0 %v1842
        %2132 = vmatpush1.msra.mxu0 %v1841
        %2133 = vmatprep.subr.mxu0 %v1840
        %2134 = vmatpush1.msra.mxu0 %v1839
        %2135 = vmatprep.subr.mxu0 %v1838
        %2136 = vmatpush1.msra.mxu0 %v1837
        %2137 = vmatprep.subr.mxu0 %v1836
        %2138 = vmatpush1.msra.mxu0 %v1835
        %2139 = vmatprep.subr.mxu0 %v1834
        %2140 = vmatpush1.msra.mxu0 %v1833
        %2141 = vmatprep.subr.mxu0 %v1832
        %2142 = vmatpush1.msra.mxu0 %v1831
        %2143 = vmatprep.subr.mxu0 %v1830
        %2144 = vmatpush1.msra.mxu0 %v1829
        %2145 = vmatprep.subr.mxu0 %v1828
        %2146 = vmatpush1.msra.mxu0 %v1827
        %2147 = vmatprep.subr.mxu0 %v1890
        %2148 = vmatpush2.msra.mxu0 %v1889
        %2149 = vmatprep.subr.mxu0 %v1888
        %2150 = vmatpush2.msra.mxu0 %v1887
        %2151 = vmatprep.subr.mxu0 %v1886
        %2152 = vmatpush2.msra.mxu0 %v1885
        %2153 = vmatprep.subr.mxu0 %v1884
        %2154 = vmatpush2.msra.mxu0 %v1883
        %2155 = vmatprep.subr.mxu0 %v1882
        %2156 = vmatpush2.msra.mxu0 %v1881
        %2157 = vmatprep.subr.mxu0 %v1880
        %2158 = vmatpush2.msra.mxu0 %v1879
        %2159 = vmatprep.subr.mxu0 %v1878
        %2160 = vmatpush2.msra.mxu0 %v1877
        %2161 = vmatprep.subr.mxu0 %v1876
        %2162 = vmatpush2.msra.mxu0 %v1875
        %2163 = vmatprep.subr.mxu0 %v1874
        %2164 = vmatpush2.msra.mxu0 %v1873
        %2165 = vmatprep.subr.mxu0 %v1872
        %2166 = vmatpush2.msra.mxu0 %v1871
        %2167 = vmatprep.subr.mxu0 %v1870
        %2168 = vmatpush2.msra.mxu0 %v1869
        %2169 = vmatprep.subr.mxu0 %v1868
        %2170 = vmatpush2.msra.mxu0 %v1867
        %2171 = vmatprep.subr.mxu0 %v1866
        %2172 = vmatpush2.msra.mxu0 %v1865
        %2173 = vmatprep.subr.mxu0 %v1864
        %2174 = vmatpush2.msra.mxu0 %v1863
        %2175 = vmatprep.subr.mxu0 %v1862
        %2176 = vmatpush2.msra.mxu0 %v1861
        %2177 = vmatprep.subr.mxu0 %v1860
        %2178 = vmatpush2.msra.mxu0 %v1859
        %2179 = vmatprep.mubr.f32.mxu0 %v1286
        %2180 = vmatmul.mubr.f32.gmra.mxu0 %v1285
        %v2181 = vpop.f32.mrf.mxu0
        %v2182 = vadd.f32 0.0, %v2181
        %v2183 = vpop.f32.mrf.mxu0
        %v2184 = vadd.f32 0.0, %v2183
        %2185 = vdwg.mxu0
        %v2187 = vsel %vm979, %v2114, 0
        %2189 = vmatprep.subr.mxu0 0.0
        %2190 = vmatpush1.msra.mxu0 0.0
        %2191 = vmatprep.subr.mxu0 0.0
        %2192 = vmatpush1.msra.mxu0 0.0
        %2193 = vmatprep.subr.mxu0 0.0
        %2194 = vmatpush1.msra.mxu0 0.0
        %2195 = vmatprep.subr.mxu0 0.0
        %2196 = vmatpush1.msra.mxu0 0.0
        %2197 = vmatprep.subr.mxu0 0.0
        %2198 = vmatpush1.msra.mxu0 0.0
        %2199 = vmatprep.subr.mxu0 0.0
        %2200 = vmatpush1.msra.mxu0 0.0
        %2201 = vmatprep.subr.mxu0 0.0
        %2202 = vmatpush1.msra.mxu0 0.0
        %2203 = vmatprep.subr.mxu0 0.0
        %2204 = vmatpush1.msra.mxu0 0.0
        %2205 = vmatprep.subr.mxu0 0.0
        %2206 = vmatpush1.msra.mxu0 0.0
        %2207 = vmatprep.subr.mxu0 0.0
        %2208 = vmatpush1.msra.mxu0 0.0
        %2209 = vmatprep.subr.mxu0 0.0
        %2210 = vmatpush1.msra.mxu0 0.0
        %2211 = vmatprep.subr.mxu0 0.0
        %2212 = vmatpush1.msra.mxu0 0.0
        %2213 = vmatprep.subr.mxu0 0.0
        %2214 = vmatpush1.msra.mxu0 0.0
        %2215 = vmatprep.subr.mxu0 0.0
        %2216 = vmatpush1.msra.mxu0 0.0
        %2217 = vmatprep.subr.mxu0 0.0
        %2218 = vmatpush1.msra.mxu0 0.0
        %2219 = vmatprep.subr.mxu0 %v2184
        %2220 = vmatpush1.msra.mxu0 %v2182
        %2221 = vmatprep.subr.mxu0 0.0
        %2222 = vmatpush2.msra.mxu0 0.0
        %2223 = vmatprep.subr.mxu0 0.0
        %2224 = vmatpush2.msra.mxu0 0.0
        %2225 = vmatprep.subr.mxu0 0.0
        %2226 = vmatpush2.msra.mxu0 0.0
        %2227 = vmatprep.subr.mxu0 0.0
        %2228 = vmatpush2.msra.mxu0 0.0
        %2229 = vmatprep.subr.mxu0 0.0
        %2230 = vmatpush2.msra.mxu0 0.0
        %2231 = vmatprep.subr.mxu0 0.0
        %2232 = vmatpush2.msra.mxu0 0.0
        %2233 = vmatprep.subr.mxu0 0.0
        %2234 = vmatpush2.msra.mxu0 0.0
        %2235 = vmatprep.subr.mxu0 0.0
        %2236 = vmatpush2.msra.mxu0 0.0
        %2237 = vmatprep.subr.mxu0 0.0
        %2238 = vmatpush2.msra.mxu0 0.0
        %2239 = vmatprep.subr.mxu0 0.0
        %2240 = vmatpush2.msra.mxu0 0.0
        %2241 = vmatprep.subr.mxu0 0.0
        %2242 = vmatpush2.msra.mxu0 0.0
        %2243 = vmatprep.subr.mxu0 0.0
        %2244 = vmatpush2.msra.mxu0 0.0
        %2245 = vmatprep.subr.mxu0 0.0
        %2246 = vmatpush2.msra.mxu0 0.0
        %2247 = vmatprep.subr.mxu0 0.0
        %2248 = vmatpush2.msra.mxu0 0.0
        %2249 = vmatprep.subr.mxu0 0.0
        %2250 = vmatpush2.msra.mxu0 0.0
        %2251 = vmatprep.subr.mxu0 0.0
        %2252 = vmatpush2.msra.mxu0 0.0
        %2253 = vmatprep.mubr.f32.mxu0 0.0
        %2254 = vmatmul.mubr.f32.gmra.mxu0 %v2187
        %v2255 = vpop.f32.mrf.mxu0
        %v2256 = vadd.f32 0.0, %v2255
        %v2257 = vpop.f32.mrf.mxu0
        %v2258 = vadd.f32 0.0, %v2257
        %2259 = vdwg.mxu0
        %v2260 = vadd.f32 %v2109, %v2256
        %v2261 = vadd.f32 %v2111, %v2258
        %v2262 = vld [vmem:[%s6] sm:$0xff]
        %2264 = vset.pattern.permute.xlu0 0
        %2265 = vperm.xlu0 %2264, %v2262
        %v2266 = vpop.permute.xlu0 %2265
        %v2268 = vadd.f32 %v2260, %v2266
        %v2269 = vadd.f32 %v2261, %v2266
        %v2270 = vmax.f32 %v2268, 0.0
        %v2271 = vmax.f32 %v2269, 0.0
        %v2272 = vld [vmem:[%s7] sm:$0xff]
        %v2273 = vld [vmem:[%s7 + $0x8] sm:$0xff]
        %v2274 = vld [vmem:[%s7 + $0x10] sm:$0xff]
        %v2275 = vld [vmem:[%s7 + $0x18] sm:$0xff]
        %v2276 = vld [vmem:[%s8] sm:$0xff]
        %v2277 = vld [vmem:[%s8 + $0x8] sm:$0xff]
        %v2278 = vld [vmem:[%s8 + $0x10] sm:$0xff]
        %v2279 = vld [vmem:[%s8 + $0x18] sm:$0xff]
        %2281 = vset.pattern.permute.xlu0 0
        %2282 = vperm.xlu0 %2281, %v2276
        %v2283 = vpop.permute.xlu0 %2282
        %2286 = vset.pattern.permute.xlu0 0
        %2287 = vperm.xlu0 %2286, %v2277
        %v2288 = vpop.permute.xlu0 %2287
        %2291 = vset.pattern.permute.xlu0 0
        %2292 = vperm.xlu0 %2291, %v2278
        %v2293 = vpop.permute.xlu0 %2292
        %2296 = vset.pattern.permute.xlu0 0
        %2297 = vperm.xlu0 %2296, %v2279
        %v2298 = vpop.permute.xlu0 %2297
        %v2301 = vsel %vm979, %v2272, 0
        %v2304 = vsel %vm979, %v2273, 0
        %v2307 = vsel %vm979, %v2274, 0
        %v2310 = vsel %vm979, %v2275, 0
        %2312 = vmatprep.subr.mxu0 0.0
        %2313 = vmatpush1.msra.mxu0 0.0
        %2314 = vmatprep.subr.mxu0 0.0
        %2315 = vmatpush1.msra.mxu0 0.0
        %2316 = vmatprep.subr.mxu0 0.0
        %2317 = vmatpush1.msra.mxu0 0.0
        %2318 = vmatprep.subr.mxu0 0.0
        %2319 = vmatpush1.msra.mxu0 0.0
        %2320 = vmatprep.subr.mxu0 0.0
        %2321 = vmatpush1.msra.mxu0 0.0
        %2322 = vmatprep.subr.mxu0 0.0
        %2323 = vmatpush1.msra.mxu0 0.0
        %2324 = vmatprep.subr.mxu0 0.0
        %2325 = vmatpush1.msra.mxu0 0.0
        %2326 = vmatprep.subr.mxu0 0.0
        %2327 = vmatpush1.msra.mxu0 0.0
        %2328 = vmatprep.subr.mxu0 0.0
        %2329 = vmatpush1.msra.mxu0 0.0
        %2330 = vmatprep.subr.mxu0 0.0
        %2331 = vmatpush1.msra.mxu0 0.0
        %2332 = vmatprep.subr.mxu0 0.0
        %2333 = vmatpush1.msra.mxu0 0.0
        %2334 = vmatprep.subr.mxu0 0.0
        %2335 = vmatpush1.msra.mxu0 0.0
        %2336 = vmatprep.subr.mxu0 0.0
        %2337 = vmatpush1.msra.mxu0 0.0
        %2338 = vmatprep.subr.mxu0 0.0
        %2339 = vmatpush1.msra.mxu0 0.0
        %2340 = vmatprep.subr.mxu0 0.0
        %2341 = vmatpush1.msra.mxu0 0.0
        %2342 = vmatprep.subr.mxu0 %v2271
        %2343 = vmatpush1.msra.mxu0 %v2270
        %2344 = vmatprep.subr.mxu0 0.0
        %2345 = vmatpush2.msra.mxu0 0.0
        %2346 = vmatprep.subr.mxu0 0.0
        %2347 = vmatpush2.msra.mxu0 0.0
        %2348 = vmatprep.subr.mxu0 0.0
        %2349 = vmatpush2.msra.mxu0 0.0
        %2350 = vmatprep.subr.mxu0 0.0
        %2351 = vmatpush2.msra.mxu0 0.0
        %2352 = vmatprep.subr.mxu0 0.0
        %2353 = vmatpush2.msra.mxu0 0.0
        %2354 = vmatprep.subr.mxu0 0.0
        %2355 = vmatpush2.msra.mxu0 0.0
        %2356 = vmatprep.subr.mxu0 0.0
        %2357 = vmatpush2.msra.mxu0 0.0
        %2358 = vmatprep.subr.mxu0 0.0
        %2359 = vmatpush2.msra.mxu0 0.0
        %2360 = vmatprep.subr.mxu0 0.0
        %2361 = vmatpush2.msra.mxu0 0.0
        %2362 = vmatprep.subr.mxu0 0.0
        %2363 = vmatpush2.msra.mxu0 0.0
        %2364 = vmatprep.subr.mxu0 0.0
        %2365 = vmatpush2.msra.mxu0 0.0
        %2366 = vmatprep.subr.mxu0 0.0
        %2367 = vmatpush2.msra.mxu0 0.0
        %2368 = vmatprep.subr.mxu0 0.0
        %2369 = vmatpush2.msra.mxu0 0.0
        %2370 = vmatprep.subr.mxu0 0.0
        %2371 = vmatpush2.msra.mxu0 0.0
        %2372 = vmatprep.subr.mxu0 0.0
        %2373 = vmatpush2.msra.mxu0 0.0
        %2374 = vmatprep.subr.mxu0 0.0
        %2375 = vmatpush2.msra.mxu0 0.0
        %2376 = vmatprep.mubr.f32.mxu0 0.0
        %2377 = vmatmul.mubr.f32.gmra.mxu0 %v2301
        %v2378 = vpop.f32.mrf.mxu0
        %v2379 = vadd.f32 %v2283, %v2378
        %v2380 = vpop.f32.mrf.mxu0
        %v2381 = vadd.f32 %v2283, %v2380
        %2382 = vmatprep.mubr.f32.mxu0 0.0
        %2383 = vmatmul.mubr.f32.gmra.mxu0 %v2304
        %v2384 = vpop.f32.mrf.mxu0
        %v2385 = vadd.f32 %v2288, %v2384
        %v2386 = vpop.f32.mrf.mxu0
        %v2387 = vadd.f32 %v2288, %v2386
        %2388 = vmatprep.mubr.f32.mxu0 0.0
        %2389 = vmatmul.mubr.f32.gmra.mxu0 %v2307
        %v2390 = vpop.f32.mrf.mxu0
        %v2391 = vadd.f32 %v2293, %v2390
        %v2392 = vpop.f32.mrf.mxu0
        %v2393 = vadd.f32 %v2293, %v2392
        %2394 = vmatprep.mubr.f32.mxu0 0.0
        %2395 = vmatmul.mubr.f32.gmra.mxu0 %v2310
        %v2396 = vpop.f32.mrf.mxu0
        %v2397 = vadd.f32 %v2298, %v2396
        %v2398 = vpop.f32.mrf.mxu0
        %v2399 = vadd.f32 %v2298, %v2398
        %2400 = vdwg.mxu0
        %2401 = vst [vmem:[%s325] sm:$0xff] %v2379
        %2402 = vst [vmem:[%s325 + $0x8] sm:$0xff] %v2381
        %2403 = vst [vmem:[%s325 + $0x10] sm:$0xff] %v2385
        %2404 = vst [vmem:[%s325 + $0x18] sm:$0xff] %v2387
        %2405 = vst [vmem:[%s325 + $0x20] sm:$0xff] %v2391
        %2406 = vst [vmem:[%s325 + $0x28] sm:$0xff] %v2393
        %2407 = vst [vmem:[%s325 + $0x30] sm:$0xff] %v2397
        %2408 = vst [vmem:[%s325 + $0x38] sm:$0xff] %v2399
        %s2409 = sand.u32 %s225, 1
        %s2410 = scalar_lea.sflag [#allocation3], %s2409
        %s2411 = sand.u32 %s225, 1
        %s2412 = smul.addr %s2411, 64
        %s2413 = scalar_lea.vmem [#allocation2], %s2412
        // Predicated region
        $region57: #{tpu_custom_call.1} parent=55 // pred_check
          %p2414 = pneg %p235
        $region58: #{tpu_custom_call.1} parent=55 // pred_check_branch
          %2416 = sbr.rel (%p2414) target = $region60
        $region59: #{tpu_custom_call.1} parent=55 // pred_region
          %s2418 = ssub.s32 1024, 1024
          %2419 = vsyncadd %s2410, %s2418
          %s2420 = smul.addr %s23, 8
          %s2421 = smul.addr %s2420, 128
          %s2422 = scalar_lea.hbm %s9, %s2421
          %s2423 = sshll.u32 %s2413, 4
          %s2424 = int_to_ptr.vmem [resolvable:$true] %s2423
          %2429 = dma.vmem_to_hbm [thread:$0]  %s2424, 1024, %s2422, %s2410, 256, 256, 16
        $region60: #{tpu_custom_call.1} parent=55 // pred_fallthru
          _
      $region56: #{tpu_custom_call.1} parent=5 // pred_fallthru
        _
      %p2430 = scmp.le.s32.totalorder 2, %s18
      // Predicated region
      $region61: #{tpu_custom_call.1} parent=5 // pred_check
        %p2431 = pneg %p2430
      $region62: #{tpu_custom_call.1} parent=5 // pred_check_branch
        %2433 = sbr.rel (%p2431) target = $region64
      $region63: #{tpu_custom_call.1} parent=5 // pred_region
        %s2434 = ssub.s32 %s18, 2
        // Predicated region
        $region65: #{tpu_custom_call.1} parent=63 // pred_check
          %p2435 = pneg %p241
        $region66: #{tpu_custom_call.1} parent=63 // pred_check_branch
          %2437 = sbr.rel (%p2435) target = $region68
        $region67: #{tpu_custom_call.1} parent=63 // pred_region
          %s2438 = sand.u32 %s226, 1
          %s2439 = scalar_lea.sflag [#allocation3], %s2438
          %s2440 = sand.u32 %s226, 1
          %s2441 = smul.addr %s2440, 64
          %s2442 = scalar_lea.vmem [#allocation2], %s2441
          %2443 = dma.done %s2439, 1024
        $region68: #{tpu_custom_call.1} parent=63 // pred_fallthru
          _
      $region64: #{tpu_custom_call.1} parent=5 // pred_fallthru
        _
    $region6: #{tpu_custom_call.1} parent=1 // loop_footer
      %s22 = sadd.s32 1, %s18
    $region7: #{tpu_custom_call.1} parent=1 // loop_footer_branch
      %17 = sbr.rel target = $region3
    $region8: #{tpu_custom_call.1} parent=1 // loop_exit
      _
    %2444 = vsyncpa [#allocation3], 1
    %s2445 = scalar_lea.sflag [#allocation3], 1
    %2446 = vsyncpa %s2445, 1

</llo_original>
